<compile_context>
chip_gen: v5e
topology: v5e:2x2
jax: 0.10.0
libtpu: 0.0.40
codegen_flags: <defaults>
</compile_context>

<pallas_src>
import functools

import jax
import jax.numpy as jnp
from jax import lax
from jax.experimental import pallas as pl
from jax.experimental.pallas import tpu as pltpu

BN_EPS = 1e-5


# --------------------------------------------------------------------------
# Fused kernel: qkv projection + attention + im2col 3x3 conv/BN/ReLU + residual.
# One block of Bt images per grid step; everything resident in VMEM.
# --------------------------------------------------------------------------
def _sab_fused_kernel(x_ref, wqkv_ref, bqkv_ref, w3_ref, b3_ref, o_ref, slab_ref,
                      *, W, Cq, scale):
    Bt, HW, C = x_ref.shape
    M = Bt * HW

    x = x_ref[...].reshape(M, C)                         # (M, C) f32 (leading-dim merge)
    xb = x.astype(jnp.bfloat16)

    # ---- fused 1x1 q|k|v projection: one MXU weight push instead of three ----
    qkv = jnp.dot(xb, wqkv_ref[...], preferred_element_type=jnp.float32) + bqkv_ref[...]
    q = qkv[:, :Cq].reshape(Bt, HW, Cq)
    k = qkv[:, Cq:2 * Cq].reshape(Bt, HW, Cq)
    v = qkv[:, 2 * Cq:].reshape(Bt, HW, C)

    # ---- scaled softmax attention (per image, batched NT/NN matmuls) ----------
    s = jnp.einsum("bnd,bmd->bnm", q, k, preferred_element_type=jnp.float32) * scale
    s = s - jnp.max(s, axis=-1, keepdims=True)
    p = jnp.exp(s)
    denom = jnp.sum(p, axis=-1, keepdims=True)           # (Bt, HW, 1)
    a = jnp.einsum("bnm,bmc->bnc", p.astype(jnp.bfloat16), v.astype(jnp.bfloat16),
                   preferred_element_type=jnp.float32)
    a = (a * pl.reciprocal(denom, approx=True)).reshape(M, C)   # normalize post-PV

    # ---- boundary masks, hoisted out of the 9-tap loop (integer/f32 work) -----
    n = lax.broadcasted_iota(jnp.int32, (M, C), 0)
    m_loc = n % HW                        # token index within its own image
    w_loc = n % W                         # column index
    ok_top = m_loc >= W                   # row > 0      (valid destinations, dh == -1)
    ok_bot = m_loc < HW - W               # row < H-1    (dh == +1)
    ok_left = w_loc >= 1                  # col > 0      (dw == -1)
    ok_right = w_loc <= W - 2             # col < W-1    (dw == +1)

    # ---- im2col slab: 9 rolled + masked windows packed along the lane dim -----
    t = 0
    for dh in (-1, 0, 1):
        for dw in (-1, 0, 1):
            off = dh * W + dw
            sh = (-off) % M               # roll(a, sh)[n] == a[n + off]  (mod M)
            win = a if sh == 0 else pltpu.roll(a, shift=sh, axis=0)
            mask = None
            if dh == -1:
                mask = ok_top
            elif dh == 1:
                mask = ok_bot
            if dw == -1:
                mask = ok_left if mask is None else mask & ok_left
            elif dw == 1:
                mask = ok_right if mask is None else mask & ok_right
            if mask is not None:
                win = jnp.where(mask, win, 0.0)           # f32 masking (v5e friendly)
            slab_ref[:, t * C:(t + 1) * C] = win.astype(jnp.bfloat16)
            t += 1

    # ---- 3x3 conv (+ folded BN) as ONE K = 9*C matmul, then ReLU + residual ---
    y = jnp.dot(slab_ref[...], w3_ref[...], preferred_element_type=jnp.float32)
    y = jnp.maximum(y + b3_ref[...], 0.0)
    # TODO(synk): C=32 < 128 lanes => this store is lane-masked; a lane-dense
    # (M*C/128, 128) relayout before the store is the next store-path lever.
    o_ref[...] = (y + x).reshape(Bt, HW, C)


# --------------------------------------------------------------------------
# Wrapper
# --------------------------------------------------------------------------
def _pick_block_batch(B, HW, target_rows=256):
    """Images per grid step: fill the MXU M dim (~256 rows) but keep >= 2 grid steps."""
    bt = max(1, min(B, target_rows // max(HW, 1)))
    while bt > 1 and B // bt < 2:        # v7x megacore: keep the parallel axis >= 2
        bt -= 1
    while B % bt:                        # need an exact batch split
        bt -= 1
    return bt


def sab_forward(x_nchw, kparams):
    B, C, H, W = x_nchw.shape
    HW = H * W
    Cq = C // 8
    scale = float(Cq) ** (-0.5)
    bt = _pick_block_batch(B, HW)
    M = bt * HW

    # The (HW, HW) logits are kept fully resident per image.  Guard the portability
    # ceiling (v7x: 64 MiB physical VMEM, 32 MiB scoped default).
    # TODO(synk): flash-style query tiling of the logits for very large images.
    if 2 * bt * HW * HW * 4 > 24 * 1024 * 1024:
        raise NotImplementedError(
            "image too large for unblocked attention logits; needs query tiling")

    # NCHW -> (B, HW, C) token layout (glue)
    x_flat = jnp.transpose(x_nchw, (0, 2, 3, 1)).reshape(B, HW, C).astype(jnp.float32)

    out_flat = pl.pallas_call(
        functools.partial(_sab_fused_kernel, W=W, Cq=Cq, scale=scale),
        out_shape=jax.ShapeDtypeStruct((B, HW, C), jnp.float32),
        grid=(B // bt,),
        in_specs=[
            pl.BlockSpec((bt, HW, C), lambda b: (b, 0, 0)),        # x (Bt images)
            pl.BlockSpec((C, 2 * Cq + C), lambda b: (0, 0)),       # wqkv (bf16)
            pl.BlockSpec((1, 2 * Cq + C), lambda b: (0, 0)),       # bqkv (f32)
            pl.BlockSpec((9 * C, C), lambda b: (0, 0)),            # w3 slab (BN folded)
            pl.BlockSpec((1, C), lambda b: (0, 0)),                # b3 (BN folded)
        ],
        out_specs=pl.BlockSpec((bt, HW, C), lambda b: (b, 0, 0)),
        scratch_shapes=[pltpu.VMEM((M, 9 * C), jnp.bfloat16)],     # im2col slab
        compiler_params=pltpu.CompilerParams(
            dimension_semantics=("parallel",)),        # shard batch across TCs (v7x)
    )(x_flat, kparams["wqkv"], kparams["bqkv"], kparams["w3"], kparams["b3"])

    return jnp.transpose(out_flat.reshape(B, H, W, C), (0, 3, 1, 2))


# --------------------------------------------------------------------------
# Parameters: raw (PyTorch conventions, f32) + packed kernel layout (BN folded)
# --------------------------------------------------------------------------
def make_params(key, C):
    Cq = C // 8
    ks = jax.random.split(key, 12)
    return {
        "wq": 0.1 * jax.random.normal(ks[0], (Cq, C), jnp.float32),      # (out, in)
        "wk": 0.1 * jax.random.normal(ks[1], (Cq, C), jnp.float32),
        "wv": 0.1 * jax.random.normal(ks[2], (C, C), jnp.float32),
        "bq": 0.1 * jax.random.normal(ks[3], (Cq,), jnp.float32),
        "bk": 0.1 * jax.random.normal(ks[4], (Cq,), jnp.float32),
        "bv": 0.1 * jax.random.normal(ks[5], (C,), jnp.float32),
        "w3": 0.05 * jax.random.normal(ks[6], (C, C, 3, 3), jnp.float32),  # OIHW
        "b3": 0.1 * jax.random.normal(ks[7], (C,), jnp.float32),
        # BatchNorm2d with synthetic running stats.
        # TODO(synk): training-mode BN (batch statistics) is not reproduced here.
        "bn_gamma": 1.0 + 0.1 * jax.random.normal(ks[8], (C,), jnp.float32),
        "bn_beta": 0.1 * jax.random.normal(ks[9], (C,), jnp.float32),
        "bn_mean": 0.1 * jax.random.normal(ks[10], (C,), jnp.float32),
        "bn_var": 1.0 + 0.1 * jax.random.uniform(ks[11], (C,), jnp.float32),
    }


def pack_params(raw):
    C = raw["wv"].shape[0]
    Cq = raw["wq"].shape[0]
    # Fold BatchNorm (inference mode) into the 3x3 conv weights/bias.
    s = raw["bn_gamma"] / jnp.sqrt(raw["bn_var"] + BN_EPS)              # per out-channel
    w3_folded = raw["w3"] * s[:, None, None, None]                      # OIHW * scale_o
    # (kh, kw, in, out) -> (9*C_in, C_out); row index = (kh*3 + kw)*C + c_in
    w3_slab = jnp.transpose(w3_folded, (2, 3, 1, 0)).reshape(9 * C, C)
    b3_folded = (raw["b3"] - raw["bn_mean"]) * s + raw["bn_beta"]
    # Fused q|k|v projection weight (PyTorch 1x1-conv weights are (out, in)).
    wqkv = jnp.concatenate([raw["wq"].T, raw["wk"].T, raw["wv"].T], axis=1)  # (C, 2Cq+C)
    bqkv = jnp.concatenate([raw["bq"], raw["bk"], raw["bv"]]).reshape(1, 2 * Cq + C)
    return {
        "wqkv": wqkv.astype(jnp.bfloat16),
        "bqkv": bqkv.astype(jnp.float32),
        "w3": w3_slab.astype(jnp.bfloat16),
        "b3": b3_folded.reshape(1, C).astype(jnp.float32),
    }


# --------------------------------------------------------------------------
# Independent pure-JAX f32 reference (lax.conv for the 3x3, explicit BN)
# --------------------------------------------------------------------------
def sab_reference(x_nchw, raw):
    B, C, H, W = x_nchw.shape
    HW, Cq = H * W, C // 8
    x = jnp.transpose(x_nchw, (0, 2, 3, 1)).reshape(B, HW, C)
    q = jnp.einsum("bnc,oc->bno", x, raw["wq"]) + raw["bq"]
    k = jnp.einsum("bnc,oc->bno", x, raw["wk"]) + raw["bk"]
    v = jnp.einsum("bnc,oc->bno", x, raw["wv"]) + raw["bv"]
    s = jnp.einsum("bnd,bmd->bnm", q, k) * (float(Cq) ** -0.5)
    p = jax.nn.softmax(s, axis=-1)
    a = jnp.einsum("bnm,bmc->bnc", p, v).reshape(B, H, W, C)
    w_hwio = jnp.transpose(raw["w3"], (2, 3, 1, 0))                     # OIHW -> HWIO
    conv = lax.conv_general_dilated(a, w_hwio, (1, 1), "SAME",
                                    dimension_numbers=("NHWC", "HWIO", "NHWC"))
    z = conv + raw["b3"]
    inv_std = 1.0 / jnp.sqrt(raw["bn_var"] + BN_EPS)
    y = (z - raw["bn_mean"]) * inv_std * raw["bn_gamma"] + raw["bn_beta"]
    y = jnp.maximum(y, 0.0) + x.reshape(B, H, W, C)
    return jnp.transpose(y, (0, 3, 1, 2))


if __name__ == "__main__":
    B, C, H, W = 2, 32, 8, 8   # channels divisible by 8 (Cq = C // 8 query/key channels)
    key = jax.random.PRNGKey(0)
    kx, kp = jax.random.split(key)
    x = jax.random.normal(kx, (B, C, H, W), jnp.float32)
    raw = make_params(kp, C)
    kparams = pack_params(raw)

    out = jax.block_until_ready(sab_forward(x, kparams))
    ref = jax.block_until_ready(sab_reference(x, raw))

    assert out.shape == (B, C, H, W), out.shape
    err = float(jnp.max(jnp.abs(out - ref)))
    # Kernel uses bf16 MXU operands (f32 accumulation) and an approx reciprocal;
    # tolerance sized for that, still far below the magnitude of any structural error.
    if err > 3e-2:
        raise AssertionError(f"mismatch vs reference, max abs err = {err}")
    print("KERNEL_OK")
</pallas_src>

<mosaic_0001>
module attributes {stable_mosaic.version = 11 : i64} {
  func.func @_sab_fused_kernel(%arg0: i32, %arg1: memref<1x64x32xf32, #tpu.memory_space<vmem>>, %arg2: memref<32x40xbf16, #tpu.memory_space<vmem>>, %arg3: memref<1x40xf32, #tpu.memory_space<vmem>>, %arg4: memref<288x32xbf16, #tpu.memory_space<vmem>>, %arg5: memref<1x32xf32, #tpu.memory_space<vmem>>, %arg6: memref<1x64x32xf32, #tpu.memory_space<vmem>>, %arg7: memref<64x288xbf16, #tpu.memory_space<vmem>>) attributes {dimension_semantics = [#tpu.dimension_semantics<parallel>], iteration_bounds = array<i64: 2>, scalar_prefetch = 0 : i64, scratch_operands = 1 : i64, tpu.core_type = #tpu.core_type<tc>, window_params = [{transform_indices = @transform_0, window_bounds = array<i64: 1, 64, 32>}, {pipeline_mode = #tpu.pipeline_mode<synchronous>, transform_indices = @transform_1, window_bounds = array<i64: 32, 40>}, {pipeline_mode = #tpu.pipeline_mode<synchronous>, transform_indices = @transform_2, window_bounds = array<i64: 1, 40>}, {pipeline_mode = #tpu.pipeline_mode<synchronous>, transform_indices = @transform_3, window_bounds = array<i64: 288, 32>}, {pipeline_mode = #tpu.pipeline_mode<synchronous>, transform_indices = @transform_4, window_bounds = array<i64: 1, 32>}, {transform_indices = @transform_5, window_bounds = array<i64: 1, 64, 32>}]} {
    %c0 = arith.constant 0 : index
    %c0_0 = arith.constant 0 : index
    %c0_1 = arith.constant 0 : index
    %0 = vector.load %arg1[%c0, %c0_0, %c0_1] : memref<1x64x32xf32, #tpu.memory_space<vmem>>, vector<1x64x32xf32>
    %1 = vector.shape_cast %0 : vector<1x64x32xf32> to vector<64x32xf32>
    %2 = arith.truncf %1 : vector<64x32xf32> to vector<64x32xbf16>
    %c0_2 = arith.constant 0 : index
    %c0_3 = arith.constant 0 : index
    %3 = vector.load %arg2[%c0_2, %c0_3] : memref<32x40xbf16, #tpu.memory_space<vmem>>, vector<32x40xbf16>
    %cst = arith.constant dense<0.000000e+00> : vector<64x40xf32>
    %4 = tpu.matmul %2, %3, %cst {dimension_numbers = #tpu.dot_dimension_numbers<[1], [0], [0], [1], [0, 0, 1, 1], [], []>} : vector<64x32xbf16>, vector<32x40xbf16>, vector<64x40xf32> -> vector<64x40xf32>
    %c0_4 = arith.constant 0 : index
    %c0_5 = arith.constant 0 : index
    %5 = vector.load %arg3[%c0_4, %c0_5] : memref<1x40xf32, #tpu.memory_space<vmem>>, vector<1x40xf32>
    %6 = vector.broadcast %5 : vector<1x40xf32> to vector<64x40xf32>
    %7 = arith.addf %4, %6 : vector<64x40xf32>
    %8 = vector.extract_strided_slice %7 {offsets = [0, 0], sizes = [64, 4], strides = [1, 1]} : vector<64x40xf32> to vector<64x4xf32>
    %9 = vector.shape_cast %8 : vector<64x4xf32> to vector<1x64x4xf32>
    %10 = vector.extract_strided_slice %7 {offsets = [0, 4], sizes = [64, 4], strides = [1, 1]} : vector<64x40xf32> to vector<64x4xf32>
    %11 = vector.shape_cast %10 : vector<64x4xf32> to vector<1x64x4xf32>
    %12 = vector.extract_strided_slice %7 {offsets = [0, 8], sizes = [64, 32], strides = [1, 1]} : vector<64x40xf32> to vector<64x32xf32>
    %13 = vector.shape_cast %12 : vector<64x32xf32> to vector<1x64x32xf32>
    "tpu.trace_start"() <{level = 10 : i32, message = "bnd,bmd->bnm"}> : () -> ()
    %cst_6 = arith.constant dense<0.000000e+00> : vector<1x64x64xf32>
    %14 = tpu.matmul %9, %11, %cst_6 {dimension_numbers = #tpu.dot_dimension_numbers<[2], [2], [1], [1], [0, 0, 0, 1, 1, 1], [0], [0]>} : vector<1x64x4xf32>, vector<1x64x4xf32>, vector<1x64x64xf32> -> vector<1x64x64xf32>
    "tpu.trace_stop"() : () -> ()
    %cst_7 = arith.constant 5.000000e-01 : f32
    %15 = vector.broadcast %cst_7 : f32 to vector<1x64x64xf32>
    %16 = arith.mulf %14, %15 : vector<1x64x64xf32>
    %cst_8 = arith.constant dense<0xFF800000> : vector<1x64xf32>
    %17 = vector.multi_reduction <maximumf>, %16, %cst_8 [2] : vector<1x64x64xf32> to vector<1x64xf32>
    %18 = vector.shape_cast %17 : vector<1x64xf32> to vector<1x64x1xf32>
    %19 = vector.broadcast %18 : vector<1x64x1xf32> to vector<1x64x64xf32>
    %20 = arith.subf %16, %19 : vector<1x64x64xf32>
    %21 = math.exp %20 : vector<1x64x64xf32>
    %cst_9 = arith.constant dense<0.000000e+00> : vector<1x64xf32>
    %22 = vector.multi_reduction <add>, %21, %cst_9 [2] : vector<1x64x64xf32> to vector<1x64xf32>
    %23 = vector.shape_cast %22 : vector<1x64xf32> to vector<1x64x1xf32>
    %24 = arith.truncf %21 : vector<1x64x64xf32> to vector<1x64x64xbf16>
    %25 = arith.truncf %13 : vector<1x64x32xf32> to vector<1x64x32xbf16>
    "tpu.trace_start"() <{level = 10 : i32, message = "bnm,bmc->bnc"}> : () -> ()
    %cst_10 = arith.constant dense<0.000000e+00> : vector<1x64x32xf32>
    %26 = tpu.matmul %24, %25, %cst_10 {dimension_numbers = #tpu.dot_dimension_numbers<[2], [1], [1], [2], [0, 0, 0, 1, 1, 2], [0], [0]>} : vector<1x64x64xbf16>, vector<1x64x32xbf16>, vector<1x64x32xf32> -> vector<1x64x32xf32>
    "tpu.trace_stop"() : () -> ()
    %27 = tpu.reciprocal %23 {approx = true} : vector<1x64x1xf32> -> vector<1x64x1xf32>
    %28 = vector.broadcast %27 : vector<1x64x1xf32> to vector<1x64x32xf32>
    %29 = arith.mulf %26, %28 : vector<1x64x32xf32>
    %30 = vector.shape_cast %29 : vector<1x64x32xf32> to vector<64x32xf32>
    %31 = tpu.iota {dimensions = array<i32: 0>} : vector<64x32xi32>
    %c64_i32 = arith.constant 64 : i32
    %c0_i32 = arith.constant 0 : i32
    %32 = arith.cmpi eq, %c64_i32, %c0_i32 : i32
    %c1_i32 = arith.constant 1 : i32
    %33 = arith.select %32, %c1_i32, %c64_i32 : i32
    %34 = vector.broadcast %33 : i32 to vector<64x32xi32>
    %35 = arith.remsi %31, %34 : vector<64x32xi32>
    %c0_i32_11 = arith.constant 0 : i32
    %36 = vector.broadcast %c0_i32_11 : i32 to vector<64x32xi32>
    %37 = arith.cmpi ne, %35, %36 : vector<64x32xi32>
    %c0_i32_12 = arith.constant 0 : i32
    %38 = vector.broadcast %c0_i32_12 : i32 to vector<64x32xi32>
    %39 = arith.cmpi slt, %35, %38 : vector<64x32xi32>
    %c0_i32_13 = arith.constant 0 : i32
    %40 = arith.cmpi slt, %33, %c0_i32_13 : i32
    %41 = vector.broadcast %40 : i1 to vector<64x32xi1>
    %42 = vector.broadcast %41 : vector<64x32xi1> to vector<64x32xi1>
    %43 = arith.xori %39, %42 : vector<64x32xi1>
    %44 = arith.andi %43, %37 : vector<64x32xi1>
    %45 = vector.broadcast %33 : i32 to vector<64x32xi32>
    %46 = arith.addi %35, %45 : vector<64x32xi32>
    %47 = arith.select %44, %46, %35 : vector<64x32xi1>, vector<64x32xi32>
    %c8_i32 = arith.constant 8 : i32
    %c0_i32_14 = arith.constant 0 : i32
    %48 = arith.cmpi eq, %c8_i32, %c0_i32_14 : i32
    %c1_i32_15 = arith.constant 1 : i32
    %49 = arith.select %48, %c1_i32_15, %c8_i32 : i32
    %50 = vector.broadcast %49 : i32 to vector<64x32xi32>
    %51 = arith.remsi %31, %50 : vector<64x32xi32>
    %c0_i32_16 = arith.constant 0 : i32
    %52 = vector.broadcast %c0_i32_16 : i32 to vector<64x32xi32>
    %53 = arith.cmpi ne, %51, %52 : vector<64x32xi32>
    %c0_i32_17 = arith.constant 0 : i32
    %54 = vector.broadcast %c0_i32_17 : i32 to vector<64x32xi32>
    %55 = arith.cmpi slt, %51, %54 : vector<64x32xi32>
    %c0_i32_18 = arith.constant 0 : i32
    %56 = arith.cmpi slt, %49, %c0_i32_18 : i32
    %57 = vector.broadcast %56 : i1 to vector<64x32xi1>
    %58 = vector.broadcast %57 : vector<64x32xi1> to vector<64x32xi1>
    %59 = arith.xori %55, %58 : vector<64x32xi1>
    %60 = arith.andi %59, %53 : vector<64x32xi1>
    %61 = vector.broadcast %49 : i32 to vector<64x32xi32>
    %62 = arith.addi %51, %61 : vector<64x32xi32>
    %63 = arith.select %60, %62, %51 : vector<64x32xi1>, vector<64x32xi32>
    %c8_i32_19 = arith.constant 8 : i32
    %64 = vector.broadcast %c8_i32_19 : i32 to vector<64x32xi32>
    %65 = arith.cmpi sge, %47, %64 : vector<64x32xi32>
    %c56_i32 = arith.constant 56 : i32
    %66 = vector.broadcast %c56_i32 : i32 to vector<64x32xi32>
    %67 = arith.cmpi slt, %47, %66 : vector<64x32xi32>
    %c1_i32_20 = arith.constant 1 : i32
    %68 = vector.broadcast %c1_i32_20 : i32 to vector<64x32xi32>
    %69 = arith.cmpi sge, %63, %68 : vector<64x32xi32>
    %c6_i32 = arith.constant 6 : i32
    %70 = vector.broadcast %c6_i32 : i32 to vector<64x32xi32>
    %71 = arith.cmpi sle, %63, %70 : vector<64x32xi32>
    %c9_i32 = arith.constant 9 : i32
    %72 = tpu.dynamic_rotate %30 by %c9_i32 dim 0 : vector<64x32xf32>, i32 -> vector<64x32xf32>
    %73 = arith.andi %65, %69 : vector<64x32xi1>
    %cst_21 = arith.constant 0.000000e+00 : f32
    %74 = vector.broadcast %cst_21 : f32 to vector<64x32xf32>
    %75 = arith.select %73, %72, %74 : vector<64x32xi1>, vector<64x32xf32>
    %76 = arith.truncf %75 : vector<64x32xf32> to vector<64x32xbf16>
    %c0_22 = arith.constant 0 : index
    %c0_23 = arith.constant 0 : index
    %77 = vector.load %arg7[%c0_22, %c0_23] : memref<64x288xbf16, #tpu.memory_space<vmem>>, vector<64x32xbf16>
    tpu.vector_store %arg7[%c0_22, %c0_23], %76 {strides = array<i32>} : memref<64x288xbf16, #tpu.memory_space<vmem>>, vector<64x32xbf16>,
    %c8_i32_24 = arith.constant 8 : i32
    %78 = tpu.dynamic_rotate %30 by %c8_i32_24 dim 0 : vector<64x32xf32>, i32 -> vector<64x32xf32>
    %cst_25 = arith.constant 0.000000e+00 : f32
    %79 = vector.broadcast %cst_25 : f32 to vector<64x32xf32>
    %80 = arith.select %65, %78, %79 : vector<64x32xi1>, vector<64x32xf32>
    %81 = arith.truncf %80 : vector<64x32xf32> to vector<64x32xbf16>
    %c0_26 = arith.constant 0 : index
    %c32 = arith.constant 32 : index
    %82 = vector.load %arg7[%c0_26, %c32] : memref<64x288xbf16, #tpu.memory_space<vmem>>, vector<64x32xbf16>
    tpu.vector_store %arg7[%c0_26, %c32], %81 {strides = array<i32>} : memref<64x288xbf16, #tpu.memory_space<vmem>>, vector<64x32xbf16>,
    %c7_i32 = arith.constant 7 : i32
    %83 = tpu.dynamic_rotate %30 by %c7_i32 dim 0 : vector<64x32xf32>, i32 -> vector<64x32xf32>
    %84 = arith.andi %65, %71 : vector<64x32xi1>
    %cst_27 = arith.constant 0.000000e+00 : f32
    %85 = vector.broadcast %cst_27 : f32 to vector<64x32xf32>
    %86 = arith.select %84, %83, %85 : vector<64x32xi1>, vector<64x32xf32>
    %87 = arith.truncf %86 : vector<64x32xf32> to vector<64x32xbf16>
    %c0_28 = arith.constant 0 : index
    %c64 = arith.constant 64 : index
    %88 = vector.load %arg7[%c0_28, %c64] : memref<64x288xbf16, #tpu.memory_space<vmem>>, vector<64x32xbf16>
    tpu.vector_store %arg7[%c0_28, %c64], %87 {strides = array<i32>} : memref<64x288xbf16, #tpu.memory_space<vmem>>, vector<64x32xbf16>,
    %c1_i32_29 = arith.constant 1 : i32
    %89 = tpu.dynamic_rotate %30 by %c1_i32_29 dim 0 : vector<64x32xf32>, i32 -> vector<64x32xf32>
    %cst_30 = arith.constant 0.000000e+00 : f32
    %90 = vector.broadcast %cst_30 : f32 to vector<64x32xf32>
    %91 = arith.select %69, %89, %90 : vector<64x32xi1>, vector<64x32xf32>
    %92 = arith.truncf %91 : vector<64x32xf32> to vector<64x32xbf16>
    %c0_31 = arith.constant 0 : index
    %c96 = arith.constant 96 : index
    %93 = vector.load %arg7[%c0_31, %c96] : memref<64x288xbf16, #tpu.memory_space<vmem>>, vector<64x32xbf16>
    tpu.vector_store %arg7[%c0_31, %c96], %92 {strides = array<i32>} : memref<64x288xbf16, #tpu.memory_space<vmem>>, vector<64x32xbf16>,
    %94 = arith.truncf %30 : vector<64x32xf32> to vector<64x32xbf16>
    %c0_32 = arith.constant 0 : index
    %c128 = arith.constant 128 : index
    %95 = vector.load %arg7[%c0_32, %c128] : memref<64x288xbf16, #tpu.memory_space<vmem>>, vector<64x32xbf16>
    tpu.vector_store %arg7[%c0_32, %c128], %94 {strides = array<i32>} : memref<64x288xbf16, #tpu.memory_space<vmem>>, vector<64x32xbf16>,
    %c63_i32 = arith.constant 63 : i32
    %96 = tpu.dynamic_rotate %30 by %c63_i32 dim 0 : vector<64x32xf32>, i32 -> vector<64x32xf32>
    %cst_33 = arith.constant 0.000000e+00 : f32
    %97 = vector.broadcast %cst_33 : f32 to vector<64x32xf32>
    %98 = arith.select %71, %96, %97 : vector<64x32xi1>, vector<64x32xf32>
    %99 = arith.truncf %98 : vector<64x32xf32> to vector<64x32xbf16>
    %c0_34 = arith.constant 0 : index
    %c160 = arith.constant 160 : index
    %100 = vector.load %arg7[%c0_34, %c160] : memref<64x288xbf16, #tpu.memory_space<vmem>>, vector<64x32xbf16>
    tpu.vector_store %arg7[%c0_34, %c160], %99 {strides = array<i32>} : memref<64x288xbf16, #tpu.memory_space<vmem>>, vector<64x32xbf16>,
    %c57_i32 = arith.constant 57 : i32
    %101 = tpu.dynamic_rotate %30 by %c57_i32 dim 0 : vector<64x32xf32>, i32 -> vector<64x32xf32>
    %102 = arith.andi %67, %69 : vector<64x32xi1>
    %cst_35 = arith.constant 0.000000e+00 : f32
    %103 = vector.broadcast %cst_35 : f32 to vector<64x32xf32>
    %104 = arith.select %102, %101, %103 : vector<64x32xi1>, vector<64x32xf32>
    %105 = arith.truncf %104 : vector<64x32xf32> to vector<64x32xbf16>
    %c0_36 = arith.constant 0 : index
    %c192 = arith.constant 192 : index
    %106 = vector.load %arg7[%c0_36, %c192] : memref<64x288xbf16, #tpu.memory_space<vmem>>, vector<64x32xbf16>
    tpu.vector_store %arg7[%c0_36, %c192], %105 {strides = array<i32>} : memref<64x288xbf16, #tpu.memory_space<vmem>>, vector<64x32xbf16>,
    %c56_i32_37 = arith.constant 56 : i32
    %107 = tpu.dynamic_rotate %30 by %c56_i32_37 dim 0 : vector<64x32xf32>, i32 -> vector<64x32xf32>
    %cst_38 = arith.constant 0.000000e+00 : f32
    %108 = vector.broadcast %cst_38 : f32 to vector<64x32xf32>
    %109 = arith.select %67, %107, %108 : vector<64x32xi1>, vector<64x32xf32>
    %110 = arith.truncf %109 : vector<64x32xf32> to vector<64x32xbf16>
    %c0_39 = arith.constant 0 : index
    %c224 = arith.constant 224 : index
    %111 = vector.load %arg7[%c0_39, %c224] : memref<64x288xbf16, #tpu.memory_space<vmem>>, vector<64x32xbf16>
    tpu.vector_store %arg7[%c0_39, %c224], %110 {strides = array<i32>} : memref<64x288xbf16, #tpu.memory_space<vmem>>, vector<64x32xbf16>,
    %c55_i32 = arith.constant 55 : i32
    %112 = tpu.dynamic_rotate %30 by %c55_i32 dim 0 : vector<64x32xf32>, i32 -> vector<64x32xf32>
    %113 = arith.andi %67, %71 : vector<64x32xi1>
    %cst_40 = arith.constant 0.000000e+00 : f32
    %114 = vector.broadcast %cst_40 : f32 to vector<64x32xf32>
    %115 = arith.select %113, %112, %114 : vector<64x32xi1>, vector<64x32xf32>
    %116 = arith.truncf %115 : vector<64x32xf32> to vector<64x32xbf16>
    %c0_41 = arith.constant 0 : index
    %c256 = arith.constant 256 : index
    %117 = vector.load %arg7[%c0_41, %c256] : memref<64x288xbf16, #tpu.memory_space<vmem>>, vector<64x32xbf16>
    tpu.vector_store %arg7[%c0_41, %c256], %116 {strides = array<i32>} : memref<64x288xbf16, #tpu.memory_space<vmem>>, vector<64x32xbf16>,
    %c0_42 = arith.constant 0 : index
    %c0_43 = arith.constant 0 : index
    %118 = vector.load %arg7[%c0_42, %c0_43] : memref<64x288xbf16, #tpu.memory_space<vmem>>, vector<64x288xbf16>
    %c0_44 = arith.constant 0 : index
    %c0_45 = arith.constant 0 : index
    %119 = vector.load %arg4[%c0_44, %c0_45] : memref<288x32xbf16, #tpu.memory_space<vmem>>, vector<288x32xbf16>
    %cst_46 = arith.constant dense<0.000000e+00> : vector<64x32xf32>
    %120 = tpu.matmul %118, %119, %cst_46 {dimension_numbers = #tpu.dot_dimension_numbers<[1], [0], [0], [1], [0, 0, 1, 1], [], []>} : vector<64x288xbf16>, vector<288x32xbf16>, vector<64x32xf32> -> vector<64x32xf32>
    %c0_47 = arith.constant 0 : index
    %c0_48 = arith.constant 0 : index
    %121 = vector.load %arg5[%c0_47, %c0_48] : memref<1x32xf32, #tpu.memory_space<vmem>>, vector<1x32xf32>
    %122 = vector.broadcast %121 : vector<1x32xf32> to vector<64x32xf32>
    %123 = arith.addf %120, %122 : vector<64x32xf32>
    %cst_49 = arith.constant 0.000000e+00 : f32
    %124 = vector.broadcast %cst_49 : f32 to vector<64x32xf32>
    %125 = arith.maximumf %123, %124 : vector<64x32xf32>
    %126 = arith.addf %125, %1 : vector<64x32xf32>
    %127 = vector.shape_cast %126 : vector<64x32xf32> to vector<1x64x32xf32>
    %c0_50 = arith.constant 0 : index
    %c0_51 = arith.constant 0 : index
    %c0_52 = arith.constant 0 : index
    %128 = vector.load %arg6[%c0_50, %c0_51, %c0_52] : memref<1x64x32xf32, #tpu.memory_space<vmem>>, vector<1x64x32xf32>
    tpu.vector_store %arg6[%c0_50, %c0_51, %c0_52], %127 {strides = array<i32>} : memref<1x64x32xf32, #tpu.memory_space<vmem>>, vector<1x64x32xf32>,
    return
  }
  func.func @transform_0(%arg0: i32) -> (i32, i32, i32) {
    %c0_i32 = arith.constant 0 : i32
    %c0_i32_0 = arith.constant 0 : i32
    %c0_i32_1 = arith.constant 0 : i32
    return %arg0, %c0_i32, %c0_i32_0 : i32, i32, i32
  }
  func.func @transform_1(%arg0: i32) -> (i32, i32) {
    %c0_i32 = arith.constant 0 : i32
    %c0_i32_0 = arith.constant 0 : i32
    %c0_i32_1 = arith.constant 0 : i32
    return %c0_i32, %c0_i32_0 : i32, i32
  }
  func.func @transform_2(%arg0: i32) -> (i32, i32) {
    %c0_i32 = arith.constant 0 : i32
    %c0_i32_0 = arith.constant 0 : i32
    %c0_i32_1 = arith.constant 0 : i32
    return %c0_i32, %c0_i32_0 : i32, i32
  }
  func.func @transform_3(%arg0: i32) -> (i32, i32) {
    %c0_i32 = arith.constant 0 : i32
    %c0_i32_0 = arith.constant 0 : i32
    %c0_i32_1 = arith.constant 0 : i32
    return %c0_i32, %c0_i32_0 : i32, i32
  }
  func.func @transform_4(%arg0: i32) -> (i32, i32) {
    %c0_i32 = arith.constant 0 : i32
    %c0_i32_0 = arith.constant 0 : i32
    %c0_i32_1 = arith.constant 0 : i32
    return %c0_i32, %c0_i32_0 : i32, i32
  }
  func.func @transform_5(%arg0: i32) -> (i32, i32, i32) {
    %c0_i32 = arith.constant 0 : i32
    %c0_i32_0 = arith.constant 0 : i32
    %c0_i32_1 = arith.constant 0 : i32
    return %arg0, %c0_i32, %c0_i32_0 : i32, i32, i32
  }
}

</mosaic_0001>

<llo_original>
// kernel: tpu_custom_call.1
$region0: #{tpu_custom_call.1}
  #allocation0 [shape = 'u32[]', space=smem, size = 0x4, offset = 0x4, fixed_abs, tag = 'smem constant byte address 0x4 - core index']
  #allocation1 [shape = 'u32[72,128]{1,0:T(1,128)}', space=vmem, size = 0x9000, scoped, tag = 'internal scratch']
  #allocation2 [shape = 'bf16[64,288]{1,0:T(8,128)(2,1)}', space=vmem, size = 0xc000, scoped, tag = 'scratch operand']
  %s0 = inlined_call_operand.vmem [shape: f32[2,64,32], index: 0, kind: input, shape index: {}]
  %s1 = inlined_call_operand.vmem [shape: bf16[32,40], index: 1, kind: input, shape index: {}]
  %s2 = inlined_call_operand.vmem [shape: f32[1,40], index: 2, kind: input, shape index: {}]
  %s3 = inlined_call_operand.vmem [shape: bf16[288,32], index: 3, kind: input, shape index: {}]
  %s4 = inlined_call_operand.vmem [shape: f32[1,32], index: 4, kind: input, shape index: {}]
  %s5 = inlined_call_operand.vmem [shape: f32[2,64,32], index: 5, kind: output, shape index: {}]
  %s6 = sld [smem:[#allocation0]]
  $region53: #{tpu_custom_call.1} parent=0
    _
  %s8 = ssub.s32 1, %s6
  %s9 = scalar_select 0, %s8, %s6
  loop: start=0, step=1, limit=4
  $region2: #{tpu_custom_call.1} parent=0 // loop_pre_header
    _
  $region3: #{tpu_custom_call.1} parent=0 // loop_header
    %s11 = sphi 0, %s15
    %p12 = scmp.ge.s32.totalorder %s11, 4
    %s21 = sphi 0, %s23
    %s24 = sphi 0, %s21
    %s25 = sphi 0, %s24
    %s41 = sphi 0, %s25
    %s45 = sphi 0, %s45
    %s47 = sphi 0, %s45
    %s48 = sphi 0, %s47
    %s62 = sphi 0, %s48
    %s66 = sphi 0, %s66
    %s68 = sphi 0, %s66
    %s69 = sphi 0, %s68
    %s83 = sphi 0, %s69
    %s87 = sphi 0, %s87
    %s89 = sphi 0, %s87
    %s90 = sphi 0, %s89
    %s104 = sphi 0, %s90
    %s108 = sphi 0, %s108
    %s110 = sphi 0, %s108
    %s111 = sphi 0, %s110
    %s125 = sphi 0, %s111
    %s131 = sphi 0, %s133
    %s134 = sphi 0, %s131
    %s135 = sphi 0, %s134
    %s151 = sphi 0, %s135
  $region4: #{tpu_custom_call.1} parent=0 // loop_header_branch
    %14 = sbr.rel (%p12) target = $region8
  $region5: #{tpu_custom_call.1} parent=0 // loop_body
    %s16 = ssub.s32 %s11, 1
    %s17 = ssub.s32 %s11, 2
    %s18 = sadd.s32 %s11, 1
    %s19 = ssub.s32 %s11, %s18
    %p20 = scmp.eq.s32.totalorder %s19, 0
    %s22 = sadd.s32 %s21, 1
    %s23 = scalar_select %p20, %s21, %s22
    %p26 = pneg %p20
    %p27 = scmp.eq.s32.totalorder %s11, 1
    %p28 = por %p26, %p27
    %p29 = scmp.ne.s32.totalorder %s21, %s24
    %p30 = scmp.eq.s32.totalorder %s11, 0
    %p31 = por %p29, %p30
    %p32 = scmp.ne.s32.totalorder %s21, %s24
    %p33 = scmp.eq.s32.totalorder %s16, 1
    %p34 = por %p32, %p33
    %p35 = scmp.ne.s32.totalorder %s24, %s25
    %p36 = scmp.eq.s32.totalorder %s16, 0
    %p37 = por %p35, %p36
    %p38 = scmp.ne.s32.totalorder %s24, %s25
    %p39 = scmp.eq.s32.totalorder %s17, 1
    %p40 = por %p38, %p39
    %p42 = scmp.ne.s32.totalorder %s25, %s41
    %p43 = scmp.eq.s32.totalorder %s17, 0
    %p44 = por %p42, %p43
    %s46 = sadd.s32 %s45, 1
    %p49 = scmp.eq.s32.totalorder %s11, 1
    %p50 = scmp.ne.s32.totalorder %s45, %s47
    %p51 = scmp.eq.s32.totalorder %s11, 0
    %p52 = por %p50, %p51
    %p53 = scmp.ne.s32.totalorder %s45, %s47
    %p54 = scmp.eq.s32.totalorder %s16, 1
    %p55 = por %p53, %p54
    %p56 = scmp.ne.s32.totalorder %s47, %s48
    %p57 = scmp.eq.s32.totalorder %s16, 0
    %p58 = por %p56, %p57
    %p59 = scmp.ne.s32.totalorder %s47, %s48
    %p60 = scmp.eq.s32.totalorder %s17, 1
    %p61 = por %p59, %p60
    %p63 = scmp.ne.s32.totalorder %s48, %s62
    %p64 = scmp.eq.s32.totalorder %s17, 0
    %p65 = por %p63, %p64
    %s67 = sadd.s32 %s66, 1
    %p70 = scmp.eq.s32.totalorder %s11, 1
    %p71 = scmp.ne.s32.totalorder %s66, %s68
    %p72 = scmp.eq.s32.totalorder %s11, 0
    %p73 = por %p71, %p72
    %p74 = scmp.ne.s32.totalorder %s66, %s68
    %p75 = scmp.eq.s32.totalorder %s16, 1
    %p76 = por %p74, %p75
    %p77 = scmp.ne.s32.totalorder %s68, %s69
    %p78 = scmp.eq.s32.totalorder %s16, 0
    %p79 = por %p77, %p78
    %p80 = scmp.ne.s32.totalorder %s68, %s69
    %p81 = scmp.eq.s32.totalorder %s17, 1
    %p82 = por %p80, %p81
    %p84 = scmp.ne.s32.totalorder %s69, %s83
    %p85 = scmp.eq.s32.totalorder %s17, 0
    %p86 = por %p84, %p85
    %s88 = sadd.s32 %s87, 1
    %p91 = scmp.eq.s32.totalorder %s11, 1
    %p92 = scmp.ne.s32.totalorder %s87, %s89
    %p93 = scmp.eq.s32.totalorder %s11, 0
    %p94 = por %p92, %p93
    %p95 = scmp.ne.s32.totalorder %s87, %s89
    %p96 = scmp.eq.s32.totalorder %s16, 1
    %p97 = por %p95, %p96
    %p98 = scmp.ne.s32.totalorder %s89, %s90
    %p99 = scmp.eq.s32.totalorder %s16, 0
    %p100 = por %p98, %p99
    %p101 = scmp.ne.s32.totalorder %s89, %s90
    %p102 = scmp.eq.s32.totalorder %s17, 1
    %p103 = por %p101, %p102
    %p105 = scmp.ne.s32.totalorder %s90, %s104
    %p106 = scmp.eq.s32.totalorder %s17, 0
    %p107 = por %p105, %p106
    %s109 = sadd.s32 %s108, 1
    %p112 = scmp.eq.s32.totalorder %s11, 1
    %p113 = scmp.ne.s32.totalorder %s108, %s110
    %p114 = scmp.eq.s32.totalorder %s11, 0
    %p115 = por %p113, %p114
    %p116 = scmp.ne.s32.totalorder %s108, %s110
    %p117 = scmp.eq.s32.totalorder %s16, 1
    %p118 = por %p116, %p117
    %p119 = scmp.ne.s32.totalorder %s110, %s111
    %p120 = scmp.eq.s32.totalorder %s16, 0
    %p121 = por %p119, %p120
    %p122 = scmp.ne.s32.totalorder %s110, %s111
    %p123 = scmp.eq.s32.totalorder %s17, 1
    %p124 = por %p122, %p123
    %p126 = scmp.ne.s32.totalorder %s111, %s125
    %p127 = scmp.eq.s32.totalorder %s17, 0
    %p128 = por %p126, %p127
    %s129 = ssub.s32 %s11, %s18
    %p130 = scmp.eq.s32.totalorder %s129, 0
    %s132 = sadd.s32 %s131, 1
    %s133 = scalar_select %p130, %s131, %s132
    %p136 = pneg %p130
    %p137 = scmp.eq.s32.totalorder %s11, 1
    %p138 = por %p136, %p137
    %p139 = scmp.ne.s32.totalorder %s131, %s134
    %p140 = scmp.eq.s32.totalorder %s11, 0
    %p141 = por %p139, %p140
    %p142 = scmp.ne.s32.totalorder %s131, %s134
    %p143 = scmp.eq.s32.totalorder %s16, 1
    %p144 = por %p142, %p143
    %p145 = scmp.ne.s32.totalorder %s134, %s135
    %p146 = scmp.eq.s32.totalorder %s16, 0
    %p147 = por %p145, %p146
    %p148 = scmp.ne.s32.totalorder %s134, %s135
    %p149 = scmp.eq.s32.totalorder %s17, 1
    %p150 = por %p148, %p149
    %p152 = scmp.ne.s32.totalorder %s135, %s151
    %p153 = scmp.eq.s32.totalorder %s17, 0
    %p154 = por %p152, %p153
    %p155 = scmp.le.s32.totalorder 1, %s11
    %p156 = scmp.lt.s32.totalorder %s11, 3
    %p157 = pnand %p155, %p156
    %p158 = pneg %p157
    // Predicated region
    $region9: #{tpu_custom_call.1} parent=5 // pred_check
      _
    $region10: #{tpu_custom_call.1} parent=5 // pred_check_branch
      %160 = sbr.rel (%p157) target = $region12
    $region11: #{tpu_custom_call.1} parent=5 // pred_region
      %s161 = ssub.s32 %s11, 1
      // Predicated region
      $region13: #{tpu_custom_call.1} parent=11 // pred_check
        %p162 = pneg %p58
      $region14: #{tpu_custom_call.1} parent=11 // pred_check_branch
        %164 = sbr.rel (%p162) target = $region16
      $region15: #{tpu_custom_call.1} parent=11 // pred_region
        _
      $region16: #{tpu_custom_call.1} parent=11 // pred_fallthru
        _
      // Predicated region
      $region17: #{tpu_custom_call.1} parent=11 // pred_check
        %p165 = pneg %p79
      $region18: #{tpu_custom_call.1} parent=11 // pred_check_branch
        %167 = sbr.rel (%p165) target = $region20
      $region19: #{tpu_custom_call.1} parent=11 // pred_region
        _
      $region20: #{tpu_custom_call.1} parent=11 // pred_fallthru
        _
      // Predicated region
      $region21: #{tpu_custom_call.1} parent=11 // pred_check
        %p168 = pneg %p100
      $region22: #{tpu_custom_call.1} parent=11 // pred_check_branch
        %170 = sbr.rel (%p168) target = $region24
      $region23: #{tpu_custom_call.1} parent=11 // pred_region
        _
      $region24: #{tpu_custom_call.1} parent=11 // pred_fallthru
        _
      // Predicated region
      $region25: #{tpu_custom_call.1} parent=11 // pred_check
        %p171 = pneg %p121
      $region26: #{tpu_custom_call.1} parent=11 // pred_check_branch
        %173 = sbr.rel (%p171) target = $region28
      $region27: #{tpu_custom_call.1} parent=11 // pred_region
        _
      $region28: #{tpu_custom_call.1} parent=11 // pred_fallthru
        _
    $region12: #{tpu_custom_call.1} parent=5 // pred_fallthru
      _
    %p174 = scmp.lt.s32.totalorder %s11, 2
    // Predicated region
    $region29: #{tpu_custom_call.1} parent=5 // pred_check
      %p175 = pneg %p174
    $region30: #{tpu_custom_call.1} parent=5 // pred_check_branch
      %177 = sbr.rel (%p175) target = $region32
    $region31: #{tpu_custom_call.1} parent=5 // pred_region
      // Predicated region
      $region33: #{tpu_custom_call.1} parent=31 // pred_check
        %p178 = pneg %p31
      $region34: #{tpu_custom_call.1} parent=31 // pred_check_branch
        %180 = sbr.rel (%p178) target = $region36
      $region35: #{tpu_custom_call.1} parent=31 // pred_region
        %p181 = scmp.lt.s32.totalorder %s11, 1
        %s182 = scalar_select %p181, %s11, 1
        %s183 = smul.addr %s182, 8
        %s184 = smul.addr %s183, 8
        %s185 = scalar_lea.vmem %s0, %s184
      $region36: #{tpu_custom_call.1} parent=31 // pred_fallthru
        _
    $region32: #{tpu_custom_call.1} parent=5 // pred_fallthru
      _
    %p186 = scmp.le.s32.totalorder 1, %s11
    %p187 = scmp.lt.s32.totalorder %s11, 3
    %p188 = pnand %p186, %p187
    %p189 = pneg %p188
    // Predicated region
    $region37: #{tpu_custom_call.1} parent=5 // pred_check
      _
    $region38: #{tpu_custom_call.1} parent=5 // pred_check_branch
      %191 = sbr.rel (%p188) target = $region40
    $region39: #{tpu_custom_call.1} parent=5 // pred_region
      %s192 = ssub.s32 %s11, 1
      %p193 = scmp.lt.s32.totalorder %s16, 1
      %s194 = scalar_select %p193, %s16, 1
      %s195 = smul.addr %s194, 8
      %s196 = smul.addr %s195, 8
      %s197 = scalar_lea.vmem %s0, %s196
      %p198 = pneg %p37
      %p199 = pneg %p34
      %p200 = pneg %p58
      %p201 = pneg %p55
      %p202 = pneg %p79
      %p203 = pneg %p76
      %p204 = pneg %p100
      %p205 = pneg %p97
      %p206 = pneg %p121
      %p207 = pneg %p118
      %p208 = pneg %p147
      %p209 = pneg %p144
      %p210 = scmp.lt.s32.totalorder %s16, 1
      %s211 = scalar_select %p210, %s16, 1
      %s212 = smul.addr %s211, 8
      %s213 = smul.addr %s212, 8
      %s214 = scalar_lea.vmem %s5, %s213
      %p215 = scmp.lt.s32.totalorder %s16, 1
      %s216 = scalar_select %p215, %s16, 1
      %s217 = smul.addr %s216, 8
      %s218 = smul.addr %s217, 8
      %s219 = scalar_lea.vmem %s0, %s218
      %p220 = scmp.lt.s32.totalorder %s16, 1
      %s221 = scalar_select %p220, %s16, 1
      %s222 = smul.addr %s221, 8
      %s223 = smul.addr %s222, 8
      %s224 = scalar_lea.vmem %s5, %s223
      %v226 = vld [vmem:[%s219] sm:$0xff]
      %v227 = vld [vmem:[%s219 + $0x8] sm:$0xff]
      %v228 = vld [vmem:[%s219 + $0x10] sm:$0xff]
      %v229 = vld [vmem:[%s219 + $0x18] sm:$0xff]
      %v230 = vld [vmem:[%s219 + $0x20] sm:$0xff]
      %v231 = vld [vmem:[%s219 + $0x28] sm:$0xff]
      %v232 = vld [vmem:[%s219 + $0x30] sm:$0xff]
      %v233 = vld [vmem:[%s219 + $0x38] sm:$0xff]
      %v234 = vpack.c.bf16 %v227, %v226
      %v235 = vpack.c.bf16 %v229, %v228
      %v236 = vpack.c.bf16 %v231, %v230
      %v237 = vpack.c.bf16 %v233, %v232
      %v238 = vld [vmem:[%s1] sm:$0xf]
      %v239 = vld [vmem:[%s1 + $0x4] sm:$0xf]
      %v240 = vld [vmem:[%s1 + $0x8] sm:$0xf]
      %v241 = vld [vmem:[%s1 + $0xc] sm:$0xf]
      %v242 = vld [vmem:[%s2] sm:$0x1]
      %v244 = vperm.slane %v242, 0
      %v250 = vunpack.c.l.b16 %v238
      %v251 = vunpack.c.l.b16 %v239
      %v252 = vunpack.c.l.b16 %v240
      %v253 = vunpack.c.l.b16 %v241
      %v254 = vpack.c.b16 %v251, %v250
      %v255 = vpack.c.b16 %v253, %v252
      %vm258 = vcmask 261120
      %v260 = vsel %vm258, %v234, 0
      %v263 = vsel %vm258, %v235, 0
      %v266 = vsel %vm258, %v236, 0
      %v269 = vsel %vm258, %v237, 0
      %271 = vmatpush.bf16.msra.mxu0 0
      %272 = vmatpush.bf16.msra.mxu0 0
      %273 = vmatpush.bf16.msra.mxu0 0
      %274 = vmatpush.bf16.msra.mxu0 0
      %275 = vmatpush.bf16.msra.mxu0 0
      %276 = vmatpush.bf16.msra.mxu0 0
      %277 = vmatpush.bf16.msra.mxu0 %v255
      %278 = vmatpush.bf16.msra.mxu0 %v254
      %279 = vmatmul.bf16.gmra.mxu0 %v260
      %v280 = vpop.f32.mrf.mxu0
      %v281 = vadd.f32 %v244, %v280
      %v282 = vpop.f32.mrf.mxu0
      %v283 = vadd.f32 %v244, %v282
      %284 = vmatmul.bf16.gmra.mxu0 %v263
      %v285 = vpop.f32.mrf.mxu0
      %v286 = vadd.f32 %v244, %v285
      %v287 = vpop.f32.mrf.mxu0
      %v288 = vadd.f32 %v244, %v287
      %289 = vmatmul.bf16.gmra.mxu0 %v266
      %v290 = vpop.f32.mrf.mxu0
      %v291 = vadd.f32 %v244, %v290
      %v292 = vpop.f32.mrf.mxu0
      %v293 = vadd.f32 %v244, %v292
      %294 = vmatmul.bf16.gmra.mxu0 %v269
      %v295 = vpop.f32.mrf.mxu0
      %v296 = vadd.f32 %v244, %v295
      %v297 = vpop.f32.mrf.mxu0
      %v298 = vadd.f32 %v244, %v297
      %299 = vdwg.mxu0
      %308 = vrot.lane.b32.xlu0 %v281, 124
      %v309 = vpop.permute.xlu0 %308
      %310 = vrot.lane.b32.xlu0 %v283, 124
      %v311 = vpop.permute.xlu0 %310
      %312 = vrot.lane.b32.xlu0 %v286, 124
      %v313 = vpop.permute.xlu0 %312
      %314 = vrot.lane.b32.xlu0 %v288, 124
      %v315 = vpop.permute.xlu0 %314
      %316 = vrot.lane.b32.xlu0 %v291, 124
      %v317 = vpop.permute.xlu0 %316
      %318 = vrot.lane.b32.xlu0 %v293, 124
      %v319 = vpop.permute.xlu0 %318
      %320 = vrot.lane.b32.xlu0 %v296, 124
      %v321 = vpop.permute.xlu0 %320
      %322 = vrot.lane.b32.xlu0 %v298, 124
      %v323 = vpop.permute.xlu0 %322
      %vm324 = vcmask 31744
      %v325 = vsel %vm324, %v281, 0
      %v327 = vsel %vm324, %v283, 0
      %v329 = vsel %vm324, %v286, 0
      %v331 = vsel %vm324, %v288, 0
      %v333 = vsel %vm324, %v291, 0
      %v335 = vsel %vm324, %v293, 0
      %v337 = vsel %vm324, %v296, 0
      %v339 = vsel %vm324, %v298, 0
      %v341 = vsel %vm324, %v309, 0
      %v343 = vsel %vm324, %v311, 0
      %v345 = vsel %vm324, %v313, 0
      %v347 = vsel %vm324, %v315, 0
      %v349 = vsel %vm324, %v317, 0
      %v351 = vsel %vm324, %v319, 0
      %v353 = vsel %vm324, %v321, 0
      %v355 = vsel %vm324, %v323, 0
      %357 = vmatpush.xpose.msra.mxu0 0.0
      %358 = vmatpush.xpose.msra.mxu0 0.0
      %359 = vmatpush.xpose.msra.mxu0 0.0
      %360 = vmatpush.xpose.msra.mxu0 0.0
      %361 = vmatpush.xpose.msra.mxu0 0.0
      %362 = vmatpush.xpose.msra.mxu0 0.0
      %363 = vmatpush.xpose.msra.mxu0 0.0
      %364 = vmatpush.xpose.msra.mxu0 0.0
      %365 = vmatpush.xpose.msra.mxu0 %v355
      %366 = vmatpush.xpose.msra.mxu0 %v353
      %367 = vmatpush.xpose.msra.mxu0 %v351
      %368 = vmatpush.xpose.msra.mxu0 %v349
      %369 = vmatpush.xpose.msra.mxu0 %v347
      %370 = vmatpush.xpose.msra.mxu0 %v345
      %371 = vmatpush.xpose.msra.mxu0 %v343
      %372 = vmatpush.xpose.msra.mxu0 %v341
      %373 = vmatmul.f32.gmra.mxu0 %v325
      %v374 = vpop.f32.mrf.mxu0
      %v375 = vadd.f32 0.0, %v374
      %376 = vmatmul.f32.gmra.mxu0 %v327
      %v377 = vpop.f32.mrf.mxu0
      %v378 = vadd.f32 0.0, %v377
      %379 = vmatmul.f32.gmra.mxu0 %v329
      %v380 = vpop.f32.mrf.mxu0
      %v381 = vadd.f32 0.0, %v380
      %382 = vmatmul.f32.gmra.mxu0 %v331
      %v383 = vpop.f32.mrf.mxu0
      %v384 = vadd.f32 0.0, %v383
      %385 = vmatmul.f32.gmra.mxu0 %v333
      %v386 = vpop.f32.mrf.mxu0
      %v387 = vadd.f32 0.0, %v386
      %388 = vmatmul.f32.gmra.mxu0 %v335
      %v389 = vpop.f32.mrf.mxu0
      %v390 = vadd.f32 0.0, %v389
      %391 = vmatmul.f32.gmra.mxu0 %v337
      %v392 = vpop.f32.mrf.mxu0
      %v393 = vadd.f32 0.0, %v392
      %394 = vmatmul.f32.gmra.mxu0 %v339
      %v395 = vpop.f32.mrf.mxu0
      %v396 = vadd.f32 0.0, %v395
      %397 = vdwg.mxu0
      %v398 = vmul.f32 %v375, 0.5
      %v399 = vmul.f32 %v378, 0.5
      %v400 = vmul.f32 %v381, 0.5
      %v401 = vmul.f32 %v384, 0.5
      %v402 = vmul.f32 %v387, 0.5
      %v403 = vmul.f32 %v390, 0.5
      %v404 = vmul.f32 %v393, 0.5
      %v405 = vmul.f32 %v396, 0.5
      %vm406 = vcmask 523264
      %v407 = vsel %vm406, %v398, -inf
      %408 = vmax.xlane.f32.xlu0 %v407
      %v409 = vpop.xlane.xlu0 %408
      %v410 = vsel %vm406, %v399, -inf
      %411 = vmax.xlane.f32.xlu0 %v410
      %v412 = vpop.xlane.xlu0 %411
      %v413 = vsel %vm406, %v400, -inf
      %414 = vmax.xlane.f32.xlu0 %v413
      %v415 = vpop.xlane.xlu0 %414
      %v416 = vsel %vm406, %v401, -inf
      %417 = vmax.xlane.f32.xlu0 %v416
      %v418 = vpop.xlane.xlu0 %417
      %v419 = vsel %vm406, %v402, -inf
      %420 = vmax.xlane.f32.xlu0 %v419
      %v421 = vpop.xlane.xlu0 %420
      %v422 = vsel %vm406, %v403, -inf
      %423 = vmax.xlane.f32.xlu0 %v422
      %v424 = vpop.xlane.xlu0 %423
      %v425 = vsel %vm406, %v404, -inf
      %426 = vmax.xlane.f32.xlu0 %v425
      %v427 = vpop.xlane.xlu0 %426
      %v428 = vsel %vm406, %v405, -inf
      %429 = vmax.xlane.f32.xlu0 %v428
      %v430 = vpop.xlane.xlu0 %429
      %v431 = vsub.f32 %v398, %v409
      %v432 = vsub.f32 %v399, %v412
      %v433 = vsub.f32 %v400, %v415
      %v434 = vsub.f32 %v401, %v418
      %v435 = vsub.f32 %v402, %v421
      %v436 = vsub.f32 %v403, %v424
      %v437 = vsub.f32 %v404, %v427
      %v438 = vsub.f32 %v405, %v430
      %v439 = vmul.f32 %v431, 1.442695
      %v440 = vpow.pop %v439
      %v441 = vmul.f32 %v432, 1.442695
      %v442 = vpow.pop %v441
      %v443 = vmul.f32 %v433, 1.442695
      %v444 = vpow.pop %v443
      %v445 = vmul.f32 %v434, 1.442695
      %v446 = vpow.pop %v445
      %v447 = vmul.f32 %v435, 1.442695
      %v448 = vpow.pop %v447
      %v449 = vmul.f32 %v436, 1.442695
      %v450 = vpow.pop %v449
      %v451 = vmul.f32 %v437, 1.442695
      %v452 = vpow.pop %v451
      %v453 = vmul.f32 %v438, 1.442695
      %v454 = vpow.pop %v453
      %v455 = vsel %vm406, %v440, 0.0
      %456 = vadd.xlane.f32.xlu0 %v455
      %v457 = vpop.xlane.xlu0 %456
      %v458 = vsel %vm406, %v442, 0.0
      %459 = vadd.xlane.f32.xlu0 %v458
      %v460 = vpop.xlane.xlu0 %459
      %v461 = vsel %vm406, %v444, 0.0
      %462 = vadd.xlane.f32.xlu0 %v461
      %v463 = vpop.xlane.xlu0 %462
      %v464 = vsel %vm406, %v446, 0.0
      %465 = vadd.xlane.f32.xlu0 %v464
      %v466 = vpop.xlane.xlu0 %465
      %v467 = vsel %vm406, %v448, 0.0
      %468 = vadd.xlane.f32.xlu0 %v467
      %v469 = vpop.xlane.xlu0 %468
      %v470 = vsel %vm406, %v450, 0.0
      %471 = vadd.xlane.f32.xlu0 %v470
      %v472 = vpop.xlane.xlu0 %471
      %v473 = vsel %vm406, %v452, 0.0
      %474 = vadd.xlane.f32.xlu0 %v473
      %v475 = vpop.xlane.xlu0 %474
      %v476 = vsel %vm406, %v454, 0.0
      %477 = vadd.xlane.f32.xlu0 %v476
      %v478 = vpop.xlane.xlu0 %477
      %v479 = vpack.c.bf16 %v440, %v440
      %v480 = vpack.c.bf16 %v442, %v442
      %v481 = vpack.c.bf16 %v444, %v444
      %v482 = vpack.c.bf16 %v446, %v446
      %v483 = vpack.c.bf16 %v448, %v448
      %v484 = vpack.c.bf16 %v450, %v450
      %v485 = vpack.c.bf16 %v452, %v452
      %v486 = vpack.c.bf16 %v454, %v454
      %v487 = vpack.c.bf16 %v281, %v281
      %v488 = vpack.c.bf16 %v283, %v283
      %v489 = vpack.c.bf16 %v286, %v286
      %v490 = vpack.c.bf16 %v288, %v288
      %v491 = vpack.c.bf16 %v291, %v291
      %v492 = vpack.c.bf16 %v293, %v293
      %v493 = vpack.c.bf16 %v296, %v296
      %v494 = vpack.c.bf16 %v298, %v298
      %v503 = vunpack.c.l.b16 %v479
      %v504 = vunpack.c.l.b16 %v480
      %v505 = vunpack.c.l.b16 %v481
      %v506 = vunpack.c.l.b16 %v482
      %v507 = vunpack.c.l.b16 %v483
      %v508 = vunpack.c.l.b16 %v484
      %v509 = vunpack.c.l.b16 %v485
      %v510 = vunpack.c.l.b16 %v486
      %v511 = vpack.c.b16 %v504, %v503
      %v512 = vpack.c.b16 %v506, %v505
      %v513 = vpack.c.b16 %v508, %v507
      %v514 = vpack.c.b16 %v510, %v509
      %v523 = vunpack.c.l.b16 %v487
      %v524 = vunpack.c.l.b16 %v488
      %v525 = vunpack.c.l.b16 %v489
      %v526 = vunpack.c.l.b16 %v490
      %v527 = vunpack.c.l.b16 %v491
      %v528 = vunpack.c.l.b16 %v492
      %v529 = vunpack.c.l.b16 %v493
      %v530 = vunpack.c.l.b16 %v494
      %v531 = vpack.c.b16 %v524, %v523
      %v532 = vpack.c.b16 %v526, %v525
      %v533 = vpack.c.b16 %v528, %v527
      %v534 = vpack.c.b16 %v530, %v529
      %535 = vrot.lane.b32.xlu0 %v531, 120
      %v536 = vpop.permute.xlu0 %535
      %537 = vrot.lane.b32.xlu0 %v532, 120
      %v538 = vpop.permute.xlu0 %537
      %539 = vrot.lane.b32.xlu0 %v533, 120
      %v540 = vpop.permute.xlu0 %539
      %541 = vrot.lane.b32.xlu0 %v534, 120
      %v542 = vpop.permute.xlu0 %541
      %v548 = vsel %vm406, %v511, 0
      %v551 = vsel %vm406, %v512, 0
      %v554 = vsel %vm406, %v513, 0
      %v557 = vsel %vm406, %v514, 0
      %559 = vmatpush.bf16.msra.mxu0 0
      %560 = vmatpush.bf16.msra.mxu0 0
      %561 = vmatpush.bf16.msra.mxu0 0
      %562 = vmatpush.bf16.msra.mxu0 0
      %563 = vmatpush.bf16.msra.mxu0 %v542
      %564 = vmatpush.bf16.msra.mxu0 %v540
      %565 = vmatpush.bf16.msra.mxu0 %v538
      %566 = vmatpush.bf16.msra.mxu0 %v536
      %567 = vmatmul.bf16.gmra.mxu0 %v548
      %v568 = vpop.f32.mrf.mxu0
      %v569 = vadd.f32 0.0, %v568
      %v570 = vpop.f32.mrf.mxu0
      %v571 = vadd.f32 0.0, %v570
      %572 = vmatmul.bf16.gmra.mxu0 %v551
      %v573 = vpop.f32.mrf.mxu0
      %v574 = vadd.f32 0.0, %v573
      %v575 = vpop.f32.mrf.mxu0
      %v576 = vadd.f32 0.0, %v575
      %577 = vmatmul.bf16.gmra.mxu0 %v554
      %v578 = vpop.f32.mrf.mxu0
      %v579 = vadd.f32 0.0, %v578
      %v580 = vpop.f32.mrf.mxu0
      %v581 = vadd.f32 0.0, %v580
      %582 = vmatmul.bf16.gmra.mxu0 %v557
      %v583 = vpop.f32.mrf.mxu0
      %v584 = vadd.f32 0.0, %v583
      %v585 = vpop.f32.mrf.mxu0
      %v586 = vadd.f32 0.0, %v585
      %587 = vdwg.mxu0
      %v588 = vrcp.pop %v457
      %v589 = vrcp.pop %v460
      %v590 = vrcp.pop %v463
      %v591 = vrcp.pop %v466
      %v592 = vrcp.pop %v469
      %v593 = vrcp.pop %v472
      %v594 = vrcp.pop %v475
      %v595 = vrcp.pop %v478
      %v596 = vmul.f32 %v569, %v588
      %v597 = vmul.f32 %v571, %v589
      %v598 = vmul.f32 %v574, %v590
      %v599 = vmul.f32 %v576, %v591
      %v600 = vmul.f32 %v579, %v592
      %v601 = vmul.f32 %v581, %v593
      %v602 = vmul.f32 %v584, %v594
      %v603 = vmul.f32 %v586, %v595
      %v604 = vlaneseq
      %v605 = vshrl.u32 %v604, 7
      %v606 = vadd.s32 %v605, 8
      %v607 = vadd.s32 %v605, 16
      %v608 = vadd.s32 %v605, 24
      %v609 = vadd.s32 %v605, 32
      %v610 = vadd.s32 %v605, 40
      %v611 = vadd.s32 %v605, 48
      %v612 = vadd.s32 %v605, 56
      %vm613 = vcmp.lt.s32.totalorder %v605, 0
      %v614 = vsub.s32 0, %v605
      %v615 = vsel %vm613, %v614, %v605
      %v616 = vshrl.u32 %v615, 6
      %v617 = vand.u32 %v615, 63
      %v618 = vsub.s32 0, %v617
      %v619 = vsel %vm613, %v618, %v617
      %vm620 = vcmp.lt.s32.totalorder %v606, 0
      %v621 = vsub.s32 0, %v606
      %v622 = vsel %vm620, %v621, %v606
      %v623 = vshrl.u32 %v622, 6
      %v624 = vand.u32 %v622, 63
      %v625 = vsub.s32 0, %v624
      %v626 = vsel %vm620, %v625, %v624
      %vm627 = vcmp.lt.s32.totalorder %v607, 0
      %v628 = vsub.s32 0, %v607
      %v629 = vsel %vm627, %v628, %v607
      %v630 = vshrl.u32 %v629, 6
      %v631 = vand.u32 %v629, 63
      %v632 = vsub.s32 0, %v631
      %v633 = vsel %vm627, %v632, %v631
      %vm634 = vcmp.lt.s32.totalorder %v608, 0
      %v635 = vsub.s32 0, %v608
      %v636 = vsel %vm634, %v635, %v608
      %v637 = vshrl.u32 %v636, 6
      %v638 = vand.u32 %v636, 63
      %v639 = vsub.s32 0, %v638
      %v640 = vsel %vm634, %v639, %v638
      %vm641 = vcmp.lt.s32.totalorder %v609, 0
      %v642 = vsub.s32 0, %v609
      %v643 = vsel %vm641, %v642, %v609
      %v644 = vshrl.u32 %v643, 6
      %v645 = vand.u32 %v643, 63
      %v646 = vsub.s32 0, %v645
      %v647 = vsel %vm641, %v646, %v645
      %vm648 = vcmp.lt.s32.totalorder %v610, 0
      %v649 = vsub.s32 0, %v610
      %v650 = vsel %vm648, %v649, %v610
      %v651 = vshrl.u32 %v650, 6
      %v652 = vand.u32 %v650, 63
      %v653 = vsub.s32 0, %v652
      %v654 = vsel %vm648, %v653, %v652
      %vm655 = vcmp.lt.s32.totalorder %v611, 0
      %v656 = vsub.s32 0, %v611
      %v657 = vsel %vm655, %v656, %v611
      %v658 = vshrl.u32 %v657, 6
      %v659 = vand.u32 %v657, 63
      %v660 = vsub.s32 0, %v659
      %v661 = vsel %vm655, %v660, %v659
      %vm662 = vcmp.lt.s32.totalorder %v612, 0
      %v663 = vsub.s32 0, %v612
      %v664 = vsel %vm662, %v663, %v612
      %v665 = vshrl.u32 %v664, 6
      %v666 = vand.u32 %v664, 63
      %v667 = vsub.s32 0, %v666
      %v668 = vsel %vm662, %v667, %v666
      %vm669 = vcmp.ne.s32.totalorder %v619, 0
      %vm670 = vcmp.ne.s32.totalorder %v626, 0
      %vm671 = vcmp.ne.s32.totalorder %v633, 0
      %vm672 = vcmp.ne.s32.totalorder %v640, 0
      %vm673 = vcmp.ne.s32.totalorder %v647, 0
      %vm674 = vcmp.ne.s32.totalorder %v654, 0
      %vm675 = vcmp.ne.s32.totalorder %v661, 0
      %vm676 = vcmp.ne.s32.totalorder %v668, 0
      %vm677 = vcmp.lt.s32.totalorder %v619, 0
      %vm678 = vcmp.lt.s32.totalorder %v626, 0
      %vm679 = vcmp.lt.s32.totalorder %v633, 0
      %vm680 = vcmp.lt.s32.totalorder %v640, 0
      %vm681 = vcmp.lt.s32.totalorder %v647, 0
      %vm682 = vcmp.lt.s32.totalorder %v654, 0
      %vm683 = vcmp.lt.s32.totalorder %v661, 0
      %vm684 = vcmp.lt.s32.totalorder %v668, 0
      %vm685 = vmand %vm677, %vm669
      %vm686 = vmand %vm678, %vm670
      %vm687 = vmand %vm679, %vm671
      %vm688 = vmand %vm680, %vm672
      %vm689 = vmand %vm681, %vm673
      %vm690 = vmand %vm682, %vm674
      %vm691 = vmand %vm683, %vm675
      %vm692 = vmand %vm684, %vm676
      %v693 = vadd.s32 %v619, 64
      %v694 = vadd.s32 %v626, 64
      %v695 = vadd.s32 %v633, 64
      %v696 = vadd.s32 %v640, 64
      %v697 = vadd.s32 %v647, 64
      %v698 = vadd.s32 %v654, 64
      %v699 = vadd.s32 %v661, 64
      %v700 = vadd.s32 %v668, 64
      %v701 = vsel %vm685, %v693, %v619
      %v702 = vsel %vm686, %v694, %v626
      %v703 = vsel %vm687, %v695, %v633
      %v704 = vsel %vm688, %v696, %v640
      %v705 = vsel %vm689, %v697, %v647
      %v706 = vsel %vm690, %v698, %v654
      %v707 = vsel %vm691, %v699, %v661
      %v708 = vsel %vm692, %v700, %v668
      %vm709 = vcmp.lt.s32.totalorder %v605, 0
      %v710 = vsub.s32 0, %v605
      %v711 = vsel %vm709, %v710, %v605
      %v712 = vshrl.u32 %v711, 3
      %v713 = vand.u32 %v711, 7
      %v714 = vsub.s32 0, %v713
      %v715 = vsel %vm709, %v714, %v713
      %vm716 = vcmp.lt.s32.totalorder %v606, 0
      %v717 = vsub.s32 0, %v606
      %v718 = vsel %vm716, %v717, %v606
      %v719 = vshrl.u32 %v718, 3
      %v720 = vand.u32 %v718, 7
      %v721 = vsub.s32 0, %v720
      %v722 = vsel %vm716, %v721, %v720
      %vm723 = vcmp.lt.s32.totalorder %v607, 0
      %v724 = vsub.s32 0, %v607
      %v725 = vsel %vm723, %v724, %v607
      %v726 = vshrl.u32 %v725, 3
      %v727 = vand.u32 %v725, 7
      %v728 = vsub.s32 0, %v727
      %v729 = vsel %vm723, %v728, %v727
      %vm730 = vcmp.lt.s32.totalorder %v608, 0
      %v731 = vsub.s32 0, %v608
      %v732 = vsel %vm730, %v731, %v608
      %v733 = vshrl.u32 %v732, 3
      %v734 = vand.u32 %v732, 7
      %v735 = vsub.s32 0, %v734
      %v736 = vsel %vm730, %v735, %v734
      %vm737 = vcmp.lt.s32.totalorder %v609, 0
      %v738 = vsub.s32 0, %v609
      %v739 = vsel %vm737, %v738, %v609
      %v740 = vshrl.u32 %v739, 3
      %v741 = vand.u32 %v739, 7
      %v742 = vsub.s32 0, %v741
      %v743 = vsel %vm737, %v742, %v741
      %vm744 = vcmp.lt.s32.totalorder %v610, 0
      %v745 = vsub.s32 0, %v610
      %v746 = vsel %vm744, %v745, %v610
      %v747 = vshrl.u32 %v746, 3
      %v748 = vand.u32 %v746, 7
      %v749 = vsub.s32 0, %v748
      %v750 = vsel %vm744, %v749, %v748
      %vm751 = vcmp.lt.s32.totalorder %v611, 0
      %v752 = vsub.s32 0, %v611
      %v753 = vsel %vm751, %v752, %v611
      %v754 = vshrl.u32 %v753, 3
      %v755 = vand.u32 %v753, 7
      %v756 = vsub.s32 0, %v755
      %v757 = vsel %vm751, %v756, %v755
      %vm758 = vcmp.lt.s32.totalorder %v612, 0
      %v759 = vsub.s32 0, %v612
      %v760 = vsel %vm758, %v759, %v612
      %v761 = vshrl.u32 %v760, 3
      %v762 = vand.u32 %v760, 7
      %v763 = vsub.s32 0, %v762
      %v764 = vsel %vm758, %v763, %v762
      %vm765 = vcmp.ne.s32.totalorder %v715, 0
      %vm766 = vcmp.ne.s32.totalorder %v722, 0
      %vm767 = vcmp.ne.s32.totalorder %v729, 0
      %vm768 = vcmp.ne.s32.totalorder %v736, 0
      %vm769 = vcmp.ne.s32.totalorder %v743, 0
      %vm770 = vcmp.ne.s32.totalorder %v750, 0
      %vm771 = vcmp.ne.s32.totalorder %v757, 0
      %vm772 = vcmp.ne.s32.totalorder %v764, 0
      %vm773 = vcmp.lt.s32.totalorder %v715, 0
      %vm774 = vcmp.lt.s32.totalorder %v722, 0
      %vm775 = vcmp.lt.s32.totalorder %v729, 0
      %vm776 = vcmp.lt.s32.totalorder %v736, 0
      %vm777 = vcmp.lt.s32.totalorder %v743, 0
      %vm778 = vcmp.lt.s32.totalorder %v750, 0
      %vm779 = vcmp.lt.s32.totalorder %v757, 0
      %vm780 = vcmp.lt.s32.totalorder %v764, 0
      %vm781 = vmand %vm773, %vm765
      %vm782 = vmand %vm774, %vm766
      %vm783 = vmand %vm775, %vm767
      %vm784 = vmand %vm776, %vm768
      %vm785 = vmand %vm777, %vm769
      %vm786 = vmand %vm778, %vm770
      %vm787 = vmand %vm779, %vm771
      %vm788 = vmand %vm780, %vm772
      %v789 = vadd.s32 %v715, 8
      %v790 = vadd.s32 %v722, 8
      %v791 = vadd.s32 %v729, 8
      %v792 = vadd.s32 %v736, 8
      %v793 = vadd.s32 %v743, 8
      %v794 = vadd.s32 %v750, 8
      %v795 = vadd.s32 %v757, 8
      %v796 = vadd.s32 %v764, 8
      %v797 = vsel %vm781, %v789, %v715
      %v798 = vsel %vm782, %v790, %v722
      %v799 = vsel %vm783, %v791, %v729
      %v800 = vsel %vm784, %v792, %v736
      %v801 = vsel %vm785, %v793, %v743
      %v802 = vsel %vm786, %v794, %v750
      %v803 = vsel %vm787, %v795, %v757
      %v804 = vsel %vm788, %v796, %v764
      %vm805 = vcmp.ge.s32.totalorder %v701, 8
      %vm806 = vcmp.ge.s32.totalorder %v702, 8
      %vm807 = vcmp.ge.s32.totalorder %v703, 8
      %vm808 = vcmp.ge.s32.totalorder %v704, 8
      %vm809 = vcmp.ge.s32.totalorder %v705, 8
      %vm810 = vcmp.ge.s32.totalorder %v706, 8
      %vm811 = vcmp.ge.s32.totalorder %v707, 8
      %vm812 = vcmp.ge.s32.totalorder %v708, 8
      %vm813 = vcmp.lt.s32.totalorder %v701, 56
      %vm814 = vcmp.lt.s32.totalorder %v702, 56
      %vm815 = vcmp.lt.s32.totalorder %v703, 56
      %vm816 = vcmp.lt.s32.totalorder %v704, 56
      %vm817 = vcmp.lt.s32.totalorder %v705, 56
      %vm818 = vcmp.lt.s32.totalorder %v706, 56
      %vm819 = vcmp.lt.s32.totalorder %v707, 56
      %vm820 = vcmp.lt.s32.totalorder %v708, 56
      %vm821 = vcmp.ge.s32.totalorder %v797, 1
      %vm822 = vcmp.ge.s32.totalorder %v798, 1
      %vm823 = vcmp.ge.s32.totalorder %v799, 1
      %vm824 = vcmp.ge.s32.totalorder %v800, 1
      %vm825 = vcmp.ge.s32.totalorder %v801, 1
      %vm826 = vcmp.ge.s32.totalorder %v802, 1
      %vm827 = vcmp.ge.s32.totalorder %v803, 1
      %vm828 = vcmp.ge.s32.totalorder %v804, 1
      %vm829 = vcmp.le.s32.totalorder %v797, 6
      %vm830 = vcmp.le.s32.totalorder %v798, 6
      %vm831 = vcmp.le.s32.totalorder %v799, 6
      %vm832 = vcmp.le.s32.totalorder %v800, 6
      %vm833 = vcmp.le.s32.totalorder %v801, 6
      %vm834 = vcmp.le.s32.totalorder %v802, 6
      %vm835 = vcmp.le.s32.totalorder %v803, 6
      %vm836 = vcmp.le.s32.totalorder %v804, 6
      %v837 = vrot.slane %v596, 7
      %v838 = vrot.slane %v597, 7
      %v839 = vrot.slane %v598, 7
      %v840 = vrot.slane %v599, 7
      %v841 = vrot.slane %v600, 7
      %v842 = vrot.slane %v601, 7
      %v843 = vrot.slane %v602, 7
      %v844 = vrot.slane %v603, 7
      %vm845 = vcmp.lt.s32.totalorder %v605, 1
      %v846 = vsel %vm845, %v843, %v844
      %v847 = vsel %vm845, %v842, %v843
      %v848 = vsel %vm845, %v841, %v842
      %v849 = vsel %vm845, %v840, %v841
      %v850 = vsel %vm845, %v839, %v840
      %v851 = vsel %vm845, %v838, %v839
      %v852 = vsel %vm845, %v837, %v838
      %v853 = vsel %vm845, %v844, %v837
      %vm854 = vmand %vm805, %vm821
      %vm855 = vmand %vm806, %vm822
      %vm856 = vmand %vm807, %vm823
      %vm857 = vmand %vm808, %vm824
      %vm858 = vmand %vm809, %vm825
      %vm859 = vmand %vm810, %vm826
      %vm860 = vmand %vm811, %vm827
      %vm861 = vmand %vm812, %vm828
      %v862 = vsel %vm854, %v846, 0.0
      %v863 = vsel %vm855, %v853, 0.0
      %v864 = vsel %vm856, %v852, 0.0
      %v865 = vsel %vm857, %v851, 0.0
      %v866 = vsel %vm858, %v850, 0.0
      %v867 = vsel %vm859, %v849, 0.0
      %v868 = vsel %vm860, %v848, 0.0
      %v869 = vsel %vm861, %v847, 0.0
      %v870 = vpack.c.bf16 %v862, %v862
      %v871 = vpack.c.bf16 %v863, %v863
      %v872 = vpack.c.bf16 %v864, %v864
      %v873 = vpack.c.bf16 %v865, %v865
      %v874 = vpack.c.bf16 %v866, %v866
      %v875 = vpack.c.bf16 %v867, %v867
      %v876 = vpack.c.bf16 %v868, %v868
      %v877 = vpack.c.bf16 %v869, %v869
      %vm878 = vcmask 257024
      %879 = vst.msk [vmem:[#allocation2] sm:$0xf] %vm878, %v870
      %880 = vst.msk [vmem:[#allocation2 + $0xc] sm:$0xf] %vm878, %v871
      %881 = vst.msk [vmem:[#allocation2 + $0x18] sm:$0xf] %vm878, %v872
      %882 = vst.msk [vmem:[#allocation2 + $0x24] sm:$0xf] %vm878, %v873
      %883 = vst.msk [vmem:[#allocation2 + $0x30] sm:$0xf] %vm878, %v874
      %884 = vst.msk [vmem:[#allocation2 + $0x3c] sm:$0xf] %vm878, %v875
      %885 = vst.msk [vmem:[#allocation2 + $0x48] sm:$0xf] %vm878, %v876
      %886 = vst.msk [vmem:[#allocation2 + $0x54] sm:$0xf] %vm878, %v877
      %v887 = vsel %vm805, %v603, 0.0
      %v888 = vsel %vm806, %v596, 0.0
      %v889 = vsel %vm807, %v597, 0.0
      %v890 = vsel %vm808, %v598, 0.0
      %v891 = vsel %vm809, %v599, 0.0
      %v892 = vsel %vm810, %v600, 0.0
      %v893 = vsel %vm811, %v601, 0.0
      %v894 = vsel %vm812, %v602, 0.0
      %v895 = vpack.c.bf16 %v887, %v887
      %v896 = vpack.c.bf16 %v888, %v888
      %v897 = vpack.c.bf16 %v889, %v889
      %v898 = vpack.c.bf16 %v890, %v890
      %v899 = vpack.c.bf16 %v891, %v891
      %v900 = vpack.c.bf16 %v892, %v892
      %v901 = vpack.c.bf16 %v893, %v893
      %v902 = vpack.c.bf16 %v894, %v894
      %911 = vrot.lane.b32.xlu0 %v895, 32
      %v912 = vpop.permute.xlu0 %911
      %913 = vrot.lane.b32.xlu0 %v896, 32
      %v914 = vpop.permute.xlu0 %913
      %915 = vrot.lane.b32.xlu0 %v897, 32
      %v916 = vpop.permute.xlu0 %915
      %917 = vrot.lane.b32.xlu0 %v898, 32
      %v918 = vpop.permute.xlu0 %917
      %919 = vrot.lane.b32.xlu0 %v899, 32
      %v920 = vpop.permute.xlu0 %919
      %921 = vrot.lane.b32.xlu0 %v900, 32
      %v922 = vpop.permute.xlu0 %921
      %923 = vrot.lane.b32.xlu0 %v901, 32
      %v924 = vpop.permute.xlu0 %923
      %925 = vrot.lane.b32.xlu0 %v902, 32
      %v926 = vpop.permute.xlu0 %925
      %vm935 = vcmask 519424
      %936 = vst.msk [vmem:[#allocation2] sm:$0xf] %vm935, %v912
      %937 = vst.msk [vmem:[#allocation2 + $0xc] sm:$0xf] %vm935, %v914
      %938 = vst.msk [vmem:[#allocation2 + $0x18] sm:$0xf] %vm935, %v916
      %939 = vst.msk [vmem:[#allocation2 + $0x24] sm:$0xf] %vm935, %v918
      %940 = vst.msk [vmem:[#allocation2 + $0x30] sm:$0xf] %vm935, %v920
      %941 = vst.msk [vmem:[#allocation2 + $0x3c] sm:$0xf] %vm935, %v922
      %942 = vst.msk [vmem:[#allocation2 + $0x48] sm:$0xf] %vm935, %v924
      %943 = vst.msk [vmem:[#allocation2 + $0x54] sm:$0xf] %vm935, %v926
      %v944 = vrot.slane %v596, 1
      %v945 = vrot.slane %v597, 1
      %v946 = vrot.slane %v598, 1
      %v947 = vrot.slane %v599, 1
      %v948 = vrot.slane %v600, 1
      %v949 = vrot.slane %v601, 1
      %v950 = vrot.slane %v602, 1
      %v951 = vrot.slane %v603, 1
      %vm952 = vcmp.lt.s32.totalorder %v605, 7
      %v953 = vsel %vm952, %v950, %v951
      %v954 = vsel %vm952, %v949, %v950
      %v955 = vsel %vm952, %v948, %v949
      %v956 = vsel %vm952, %v947, %v948
      %v957 = vsel %vm952, %v946, %v947
      %v958 = vsel %vm952, %v945, %v946
      %v959 = vsel %vm952, %v944, %v945
      %v960 = vsel %vm952, %v951, %v944
      %vm961 = vmand %vm805, %vm829
      %vm962 = vmand %vm806, %vm830
      %vm963 = vmand %vm807, %vm831
      %vm964 = vmand %vm808, %vm832
      %vm965 = vmand %vm809, %vm833
      %vm966 = vmand %vm810, %vm834
      %vm967 = vmand %vm811, %vm835
      %vm968 = vmand %vm812, %vm836
      %v969 = vsel %vm961, %v960, 0.0
      %v970 = vsel %vm962, %v959, 0.0
      %v971 = vsel %vm963, %v958, 0.0
      %v972 = vsel %vm964, %v957, 0.0
      %v973 = vsel %vm965, %v956, 0.0
      %v974 = vsel %vm966, %v955, 0.0
      %v975 = vsel %vm967, %v954, 0.0
      %v976 = vsel %vm968, %v953, 0.0
      %v977 = vpack.c.bf16 %v969, %v969
      %v978 = vpack.c.bf16 %v970, %v970
      %v979 = vpack.c.bf16 %v971, %v971
      %v980 = vpack.c.bf16 %v972, %v972
      %v981 = vpack.c.bf16 %v973, %v973
      %v982 = vpack.c.bf16 %v974, %v974
      %v983 = vpack.c.bf16 %v975, %v975
      %v984 = vpack.c.bf16 %v976, %v976
      %993 = vrot.lane.b32.xlu0 %v977, 64
      %v994 = vpop.permute.xlu0 %993
      %995 = vrot.lane.b32.xlu0 %v978, 64
      %v996 = vpop.permute.xlu0 %995
      %997 = vrot.lane.b32.xlu0 %v979, 64
      %v998 = vpop.permute.xlu0 %997
      %999 = vrot.lane.b32.xlu0 %v980, 64
      %v1000 = vpop.permute.xlu0 %999
      %1001 = vrot.lane.b32.xlu0 %v981, 64
      %v1002 = vpop.permute.xlu0 %1001
      %1003 = vrot.lane.b32.xlu0 %v982, 64
      %v1004 = vpop.permute.xlu0 %1003
      %1005 = vrot.lane.b32.xlu0 %v983, 64
      %v1006 = vpop.permute.xlu0 %1005
      %1007 = vrot.lane.b32.xlu0 %v984, 64
      %v1008 = vpop.permute.xlu0 %1007
      %vm1017 = vcmask 781824
      %1018 = vst.msk [vmem:[#allocation2] sm:$0xf] %vm1017, %v994
      %1019 = vst.msk [vmem:[#allocation2 + $0xc] sm:$0xf] %vm1017, %v996
      %1020 = vst.msk [vmem:[#allocation2 + $0x18] sm:$0xf] %vm1017, %v998
      %1021 = vst.msk [vmem:[#allocation2 + $0x24] sm:$0xf] %vm1017, %v1000
      %1022 = vst.msk [vmem:[#allocation2 + $0x30] sm:$0xf] %vm1017, %v1002
      %1023 = vst.msk [vmem:[#allocation2 + $0x3c] sm:$0xf] %vm1017, %v1004
      %1024 = vst.msk [vmem:[#allocation2 + $0x48] sm:$0xf] %vm1017, %v1006
      %1025 = vst.msk [vmem:[#allocation2 + $0x54] sm:$0xf] %vm1017, %v1008
      %v1026 = vsel %vm821, %v853, 0.0
      %v1027 = vsel %vm822, %v852, 0.0
      %v1028 = vsel %vm823, %v851, 0.0
      %v1029 = vsel %vm824, %v850, 0.0
      %v1030 = vsel %vm825, %v849, 0.0
      %v1031 = vsel %vm826, %v848, 0.0
      %v1032 = vsel %vm827, %v847, 0.0
      %v1033 = vsel %vm828, %v846, 0.0
      %v1034 = vpack.c.bf16 %v1026, %v1026
      %v1035 = vpack.c.bf16 %v1027, %v1027
      %v1036 = vpack.c.bf16 %v1028, %v1028
      %v1037 = vpack.c.bf16 %v1029, %v1029
      %v1038 = vpack.c.bf16 %v1030, %v1030
      %v1039 = vpack.c.bf16 %v1031, %v1031
      %v1040 = vpack.c.bf16 %v1032, %v1032
      %v1041 = vpack.c.bf16 %v1033, %v1033
      %1050 = vrot.lane.b32.xlu0 %v1034, 96
      %v1051 = vpop.permute.xlu0 %1050
      %1052 = vrot.lane.b32.xlu0 %v1035, 96
      %v1053 = vpop.permute.xlu0 %1052
      %1054 = vrot.lane.b32.xlu0 %v1036, 96
      %v1055 = vpop.permute.xlu0 %1054
      %1056 = vrot.lane.b32.xlu0 %v1037, 96
      %v1057 = vpop.permute.xlu0 %1056
      %1058 = vrot.lane.b32.xlu0 %v1038, 96
      %v1059 = vpop.permute.xlu0 %1058
      %1060 = vrot.lane.b32.xlu0 %v1039, 96
      %v1061 = vpop.permute.xlu0 %1060
      %1062 = vrot.lane.b32.xlu0 %v1040, 96
      %v1063 = vpop.permute.xlu0 %1062
      %1064 = vrot.lane.b32.xlu0 %v1041, 96
      %v1065 = vpop.permute.xlu0 %1064
      %vm1074 = vcmask 1044224
      %1075 = vst.msk [vmem:[#allocation2] sm:$0xf] %vm1074, %v1051
      %1076 = vst.msk [vmem:[#allocation2 + $0xc] sm:$0xf] %vm1074, %v1053
      %1077 = vst.msk [vmem:[#allocation2 + $0x18] sm:$0xf] %vm1074, %v1055
      %1078 = vst.msk [vmem:[#allocation2 + $0x24] sm:$0xf] %vm1074, %v1057
      %1079 = vst.msk [vmem:[#allocation2 + $0x30] sm:$0xf] %vm1074, %v1059
      %1080 = vst.msk [vmem:[#allocation2 + $0x3c] sm:$0xf] %vm1074, %v1061
      %1081 = vst.msk [vmem:[#allocation2 + $0x48] sm:$0xf] %vm1074, %v1063
      %1082 = vst.msk [vmem:[#allocation2 + $0x54] sm:$0xf] %vm1074, %v1065
      %v1083 = vpack.c.bf16 %v596, %v596
      %v1084 = vpack.c.bf16 %v597, %v597
      %v1085 = vpack.c.bf16 %v598, %v598
      %v1086 = vpack.c.bf16 %v599, %v599
      %v1087 = vpack.c.bf16 %v600, %v600
      %v1088 = vpack.c.bf16 %v601, %v601
      %v1089 = vpack.c.bf16 %v602, %v602
      %v1090 = vpack.c.bf16 %v603, %v603
      %1091 = vst.msk [vmem:[#allocation2 + $0x4] sm:$0xf] %vm878, %v1083
      %1092 = vst.msk [vmem:[#allocation2 + $0x10] sm:$0xf] %vm878, %v1084
      %1093 = vst.msk [vmem:[#allocation2 + $0x1c] sm:$0xf] %vm878, %v1085
      %1094 = vst.msk [vmem:[#allocation2 + $0x28] sm:$0xf] %vm878, %v1086
      %1095 = vst.msk [vmem:[#allocation2 + $0x34] sm:$0xf] %vm878, %v1087
      %1096 = vst.msk [vmem:[#allocation2 + $0x40] sm:$0xf] %vm878, %v1088
      %1097 = vst.msk [vmem:[#allocation2 + $0x4c] sm:$0xf] %vm878, %v1089
      %1098 = vst.msk [vmem:[#allocation2 + $0x58] sm:$0xf] %vm878, %v1090
      %v1099 = vsel %vm829, %v959, 0.0
      %v1100 = vsel %vm830, %v958, 0.0
      %v1101 = vsel %vm831, %v957, 0.0
      %v1102 = vsel %vm832, %v956, 0.0
      %v1103 = vsel %vm833, %v955, 0.0
      %v1104 = vsel %vm834, %v954, 0.0
      %v1105 = vsel %vm835, %v953, 0.0
      %v1106 = vsel %vm836, %v960, 0.0
      %v1107 = vpack.c.bf16 %v1099, %v1099
      %v1108 = vpack.c.bf16 %v1100, %v1100
      %v1109 = vpack.c.bf16 %v1101, %v1101
      %v1110 = vpack.c.bf16 %v1102, %v1102
      %v1111 = vpack.c.bf16 %v1103, %v1103
      %v1112 = vpack.c.bf16 %v1104, %v1104
      %v1113 = vpack.c.bf16 %v1105, %v1105
      %v1114 = vpack.c.bf16 %v1106, %v1106
      %1123 = vrot.lane.b32.xlu0 %v1107, 32
      %v1124 = vpop.permute.xlu0 %1123
      %1125 = vrot.lane.b32.xlu0 %v1108, 32
      %v1126 = vpop.permute.xlu0 %1125
      %1127 = vrot.lane.b32.xlu0 %v1109, 32
      %v1128 = vpop.permute.xlu0 %1127
      %1129 = vrot.lane.b32.xlu0 %v1110, 32
      %v1130 = vpop.permute.xlu0 %1129
      %1131 = vrot.lane.b32.xlu0 %v1111, 32
      %v1132 = vpop.permute.xlu0 %1131
      %1133 = vrot.lane.b32.xlu0 %v1112, 32
      %v1134 = vpop.permute.xlu0 %1133
      %1135 = vrot.lane.b32.xlu0 %v1113, 32
      %v1136 = vpop.permute.xlu0 %1135
      %1137 = vrot.lane.b32.xlu0 %v1114, 32
      %v1138 = vpop.permute.xlu0 %1137
      %1147 = vst.msk [vmem:[#allocation2 + $0x4] sm:$0xf] %vm935, %v1124
      %1148 = vst.msk [vmem:[#allocation2 + $0x10] sm:$0xf] %vm935, %v1126
      %1149 = vst.msk [vmem:[#allocation2 + $0x1c] sm:$0xf] %vm935, %v1128
      %1150 = vst.msk [vmem:[#allocation2 + $0x28] sm:$0xf] %vm935, %v1130
      %1151 = vst.msk [vmem:[#allocation2 + $0x34] sm:$0xf] %vm935, %v1132
      %1152 = vst.msk [vmem:[#allocation2 + $0x40] sm:$0xf] %vm935, %v1134
      %1153 = vst.msk [vmem:[#allocation2 + $0x4c] sm:$0xf] %vm935, %v1136
      %1154 = vst.msk [vmem:[#allocation2 + $0x58] sm:$0xf] %vm935, %v1138
      %vm1155 = vmand %vm813, %vm821
      %vm1156 = vmand %vm814, %vm822
      %vm1157 = vmand %vm815, %vm823
      %vm1158 = vmand %vm816, %vm824
      %vm1159 = vmand %vm817, %vm825
      %vm1160 = vmand %vm818, %vm826
      %vm1161 = vmand %vm819, %vm827
      %vm1162 = vmand %vm820, %vm828
      %v1163 = vsel %vm1155, %v852, 0.0
      %v1164 = vsel %vm1156, %v851, 0.0
      %v1165 = vsel %vm1157, %v850, 0.0
      %v1166 = vsel %vm1158, %v849, 0.0
      %v1167 = vsel %vm1159, %v848, 0.0
      %v1168 = vsel %vm1160, %v847, 0.0
      %v1169 = vsel %vm1161, %v846, 0.0
      %v1170 = vsel %vm1162, %v853, 0.0
      %v1171 = vpack.c.bf16 %v1163, %v1163
      %v1172 = vpack.c.bf16 %v1164, %v1164
      %v1173 = vpack.c.bf16 %v1165, %v1165
      %v1174 = vpack.c.bf16 %v1166, %v1166
      %v1175 = vpack.c.bf16 %v1167, %v1167
      %v1176 = vpack.c.bf16 %v1168, %v1168
      %v1177 = vpack.c.bf16 %v1169, %v1169
      %v1178 = vpack.c.bf16 %v1170, %v1170
      %1187 = vrot.lane.b32.xlu0 %v1171, 64
      %v1188 = vpop.permute.xlu0 %1187
      %1189 = vrot.lane.b32.xlu0 %v1172, 64
      %v1190 = vpop.permute.xlu0 %1189
      %1191 = vrot.lane.b32.xlu0 %v1173, 64
      %v1192 = vpop.permute.xlu0 %1191
      %1193 = vrot.lane.b32.xlu0 %v1174, 64
      %v1194 = vpop.permute.xlu0 %1193
      %1195 = vrot.lane.b32.xlu0 %v1175, 64
      %v1196 = vpop.permute.xlu0 %1195
      %1197 = vrot.lane.b32.xlu0 %v1176, 64
      %v1198 = vpop.permute.xlu0 %1197
      %1199 = vrot.lane.b32.xlu0 %v1177, 64
      %v1200 = vpop.permute.xlu0 %1199
      %1201 = vrot.lane.b32.xlu0 %v1178, 64
      %v1202 = vpop.permute.xlu0 %1201
      %1211 = vst.msk [vmem:[#allocation2 + $0x4] sm:$0xf] %vm1017, %v1188
      %1212 = vst.msk [vmem:[#allocation2 + $0x10] sm:$0xf] %vm1017, %v1190
      %1213 = vst.msk [vmem:[#allocation2 + $0x1c] sm:$0xf] %vm1017, %v1192
      %1214 = vst.msk [vmem:[#allocation2 + $0x28] sm:$0xf] %vm1017, %v1194
      %1215 = vst.msk [vmem:[#allocation2 + $0x34] sm:$0xf] %vm1017, %v1196
      %1216 = vst.msk [vmem:[#allocation2 + $0x40] sm:$0xf] %vm1017, %v1198
      %1217 = vst.msk [vmem:[#allocation2 + $0x4c] sm:$0xf] %vm1017, %v1200
      %1218 = vst.msk [vmem:[#allocation2 + $0x58] sm:$0xf] %vm1017, %v1202
      %v1219 = vsel %vm813, %v597, 0.0
      %v1220 = vsel %vm814, %v598, 0.0
      %v1221 = vsel %vm815, %v599, 0.0
      %v1222 = vsel %vm816, %v600, 0.0
      %v1223 = vsel %vm817, %v601, 0.0
      %v1224 = vsel %vm818, %v602, 0.0
      %v1225 = vsel %vm819, %v603, 0.0
      %v1226 = vsel %vm820, %v596, 0.0
      %v1227 = vpack.c.bf16 %v1219, %v1219
      %v1228 = vpack.c.bf16 %v1220, %v1220
      %v1229 = vpack.c.bf16 %v1221, %v1221
      %v1230 = vpack.c.bf16 %v1222, %v1222
      %v1231 = vpack.c.bf16 %v1223, %v1223
      %v1232 = vpack.c.bf16 %v1224, %v1224
      %v1233 = vpack.c.bf16 %v1225, %v1225
      %v1234 = vpack.c.bf16 %v1226, %v1226
      %1243 = vrot.lane.b32.xlu0 %v1227, 96
      %v1244 = vpop.permute.xlu0 %1243
      %1245 = vrot.lane.b32.xlu0 %v1228, 96
      %v1246 = vpop.permute.xlu0 %1245
      %1247 = vrot.lane.b32.xlu0 %v1229, 96
      %v1248 = vpop.permute.xlu0 %1247
      %1249 = vrot.lane.b32.xlu0 %v1230, 96
      %v1250 = vpop.permute.xlu0 %1249
      %1251 = vrot.lane.b32.xlu0 %v1231, 96
      %v1252 = vpop.permute.xlu0 %1251
      %1253 = vrot.lane.b32.xlu0 %v1232, 96
      %v1254 = vpop.permute.xlu0 %1253
      %1255 = vrot.lane.b32.xlu0 %v1233, 96
      %v1256 = vpop.permute.xlu0 %1255
      %1257 = vrot.lane.b32.xlu0 %v1234, 96
      %v1258 = vpop.permute.xlu0 %1257
      %1267 = vst.msk [vmem:[#allocation2 + $0x4] sm:$0xf] %vm1074, %v1244
      %1268 = vst.msk [vmem:[#allocation2 + $0x10] sm:$0xf] %vm1074, %v1246
      %1269 = vst.msk [vmem:[#allocation2 + $0x1c] sm:$0xf] %vm1074, %v1248
      %1270 = vst.msk [vmem:[#allocation2 + $0x28] sm:$0xf] %vm1074, %v1250
      %1271 = vst.msk [vmem:[#allocation2 + $0x34] sm:$0xf] %vm1074, %v1252
      %1272 = vst.msk [vmem:[#allocation2 + $0x40] sm:$0xf] %vm1074, %v1254
      %1273 = vst.msk [vmem:[#allocation2 + $0x4c] sm:$0xf] %vm1074, %v1256
      %1274 = vst.msk [vmem:[#allocation2 + $0x58] sm:$0xf] %vm1074, %v1258
      %vm1275 = vmand %vm813, %vm829
      %vm1276 = vmand %vm814, %vm830
      %vm1277 = vmand %vm815, %vm831
      %vm1278 = vmand %vm816, %vm832
      %vm1279 = vmand %vm817, %vm833
      %vm1280 = vmand %vm818, %vm834
      %vm1281 = vmand %vm819, %vm835
      %vm1282 = vmand %vm820, %vm836
      %v1283 = vsel %vm1275, %v958, 0.0
      %v1284 = vsel %vm1276, %v957, 0.0
      %v1285 = vsel %vm1277, %v956, 0.0
      %v1286 = vsel %vm1278, %v955, 0.0
      %v1287 = vsel %vm1279, %v954, 0.0
      %v1288 = vsel %vm1280, %v953, 0.0
      %v1289 = vsel %vm1281, %v960, 0.0
      %v1290 = vsel %vm1282, %v959, 0.0
      %v1291 = vpack.c.bf16 %v1283, %v1283
      %v1292 = vpack.c.bf16 %v1284, %v1284
      %v1293 = vpack.c.bf16 %v1285, %v1285
      %v1294 = vpack.c.bf16 %v1286, %v1286
      %v1295 = vpack.c.bf16 %v1287, %v1287
      %v1296 = vpack.c.bf16 %v1288, %v1288
      %v1297 = vpack.c.bf16 %v1289, %v1289
      %v1298 = vpack.c.bf16 %v1290, %v1290
      %1299 = vst.msk [vmem:[#allocation2 + $0x8] sm:$0xf] %vm878, %v1291
      %1300 = vst.msk [vmem:[#allocation2 + $0x14] sm:$0xf] %vm878, %v1292
      %1301 = vst.msk [vmem:[#allocation2 + $0x20] sm:$0xf] %vm878, %v1293
      %1302 = vst.msk [vmem:[#allocation2 + $0x2c] sm:$0xf] %vm878, %v1294
      %1303 = vst.msk [vmem:[#allocation2 + $0x38] sm:$0xf] %vm878, %v1295
      %1304 = vst.msk [vmem:[#allocation2 + $0x44] sm:$0xf] %vm878, %v1296
      %1305 = vst.msk [vmem:[#allocation2 + $0x50] sm:$0xf] %vm878, %v1297
      %1306 = vst.msk [vmem:[#allocation2 + $0x5c] sm:$0xf] %vm878, %v1298
      %v1307 = vld [vmem:[#allocation2] sm:$0xff]
      %v1308 = vld [vmem:[#allocation2 + $0x8] sm:$0xf]
      %v1309 = vld [vmem:[#allocation2 + $0xc] sm:$0xff]
      %v1310 = vld [vmem:[#allocation2 + $0x14] sm:$0xf]
      %v1311 = vld [vmem:[#allocation2 + $0x18] sm:$0xff]
      %v1312 = vld [vmem:[#allocation2 + $0x20] sm:$0xf]
      %v1313 = vld [vmem:[#allocation2 + $0x24] sm:$0xff]
      %v1314 = vld [vmem:[#allocation2 + $0x2c] sm:$0xf]
      %v1315 = vld [vmem:[#allocation2 + $0x30] sm:$0xff]
      %v1316 = vld [vmem:[#allocation2 + $0x38] sm:$0xf]
      %v1317 = vld [vmem:[#allocation2 + $0x3c] sm:$0xff]
      %v1318 = vld [vmem:[#allocation2 + $0x44] sm:$0xf]
      %v1319 = vld [vmem:[#allocation2 + $0x48] sm:$0xff]
      %v1320 = vld [vmem:[#allocation2 + $0x50] sm:$0xf]
      %v1321 = vld [vmem:[#allocation2 + $0x54] sm:$0xff]
      %v1322 = vld [vmem:[#allocation2 + $0x5c] sm:$0xf]
      %v1323 = vld [vmem:[%s3] sm:$0xf]
      %v1324 = vld [vmem:[%s3 + $0x4] sm:$0xf]
      %v1325 = vld [vmem:[%s3 + $0x8] sm:$0xf]
      %v1326 = vld [vmem:[%s3 + $0xc] sm:$0xf]
      %v1327 = vld [vmem:[%s3 + $0x10] sm:$0xf]
      %v1328 = vld [vmem:[%s3 + $0x14] sm:$0xf]
      %v1329 = vld [vmem:[%s3 + $0x18] sm:$0xf]
      %v1330 = vld [vmem:[%s3 + $0x1c] sm:$0xf]
      %v1331 = vld [vmem:[%s3 + $0x20] sm:$0xf]
      %v1332 = vld [vmem:[%s3 + $0x24] sm:$0xf]
      %v1333 = vld [vmem:[%s3 + $0x28] sm:$0xf]
      %v1334 = vld [vmem:[%s3 + $0x2c] sm:$0xf]
      %v1335 = vld [vmem:[%s3 + $0x30] sm:$0xf]
      %v1336 = vld [vmem:[%s3 + $0x34] sm:$0xf]
      %v1337 = vld [vmem:[%s3 + $0x38] sm:$0xf]
      %v1338 = vld [vmem:[%s3 + $0x3c] sm:$0xf]
      %v1339 = vld [vmem:[%s3 + $0x40] sm:$0xf]
      %v1340 = vld [vmem:[%s3 + $0x44] sm:$0xf]
      %v1341 = vld [vmem:[%s3 + $0x48] sm:$0xf]
      %v1342 = vld [vmem:[%s3 + $0x4c] sm:$0xf]
      %v1343 = vld [vmem:[%s3 + $0x50] sm:$0xf]
      %v1344 = vld [vmem:[%s3 + $0x54] sm:$0xf]
      %v1345 = vld [vmem:[%s3 + $0x58] sm:$0xf]
      %v1346 = vld [vmem:[%s3 + $0x5c] sm:$0xf]
      %v1347 = vld [vmem:[%s3 + $0x60] sm:$0xf]
      %v1348 = vld [vmem:[%s3 + $0x64] sm:$0xf]
      %v1349 = vld [vmem:[%s3 + $0x68] sm:$0xf]
      %v1350 = vld [vmem:[%s3 + $0x6c] sm:$0xf]
      %v1351 = vld [vmem:[%s3 + $0x70] sm:$0xf]
      %v1352 = vld [vmem:[%s3 + $0x74] sm:$0xf]
      %v1353 = vld [vmem:[%s3 + $0x78] sm:$0xf]
      %v1354 = vld [vmem:[%s3 + $0x7c] sm:$0xf]
      %v1355 = vld [vmem:[%s3 + $0x80] sm:$0xf]
      %v1356 = vld [vmem:[%s3 + $0x84] sm:$0xf]
      %v1357 = vld [vmem:[%s3 + $0x88] sm:$0xf]
      %v1358 = vld [vmem:[%s3 + $0x8c] sm:$0xf]
      %v1359 = vld [vmem:[%s4] sm:$0x1]
      %v1361 = vperm.slane %v1359, 0
      %v1379 = vunpack.c.l.b16 %v1307
      %v1380 = vunpack.c.h.b16 %v1307
      %v1381 = vunpack.c.l.b16 %v1308
      %v1382 = vunpack.c.l.b16 %v1309
      %v1383 = vunpack.c.h.b16 %v1309
      %v1384 = vunpack.c.l.b16 %v1310
      %v1385 = vunpack.c.l.b16 %v1311
      %v1386 = vunpack.c.h.b16 %v1311
      %v1387 = vunpack.c.l.b16 %v1312
      %v1388 = vunpack.c.l.b16 %v1313
      %v1389 = vunpack.c.h.b16 %v1313
      %v1390 = vunpack.c.l.b16 %v1314
      %v1391 = vunpack.c.l.b16 %v1315
      %v1392 = vunpack.c.h.b16 %v1315
      %v1393 = vunpack.c.l.b16 %v1316
      %v1394 = vunpack.c.l.b16 %v1317
      %v1395 = vunpack.c.h.b16 %v1317
      %v1396 = vunpack.c.l.b16 %v1318
      %v1397 = vunpack.c.l.b16 %v1319
      %v1398 = vunpack.c.h.b16 %v1319
      %v1399 = vunpack.c.l.b16 %v1320
      %v1400 = vunpack.c.l.b16 %v1321
      %v1401 = vunpack.c.h.b16 %v1321
      %v1402 = vunpack.c.l.b16 %v1322
      %v1403 = vpack.c.b16 %v1382, %v1379
      %v1404 = vpack.c.b16 %v1383, %v1380
      %v1405 = vpack.c.b16 %v1384, %v1381
      %v1406 = vpack.c.b16 %v1388, %v1385
      %v1407 = vpack.c.b16 %v1389, %v1386
      %v1408 = vpack.c.b16 %v1390, %v1387
      %v1409 = vpack.c.b16 %v1394, %v1391
      %v1410 = vpack.c.b16 %v1395, %v1392
      %v1411 = vpack.c.b16 %v1396, %v1393
      %v1412 = vpack.c.b16 %v1400, %v1397
      %v1413 = vpack.c.b16 %v1401, %v1398
      %v1414 = vpack.c.b16 %v1402, %v1399
      %v1459 = vunpack.c.l.b16 %v1323
      %v1460 = vunpack.c.l.b16 %v1324
      %v1461 = vunpack.c.l.b16 %v1325
      %v1462 = vunpack.c.l.b16 %v1326
      %v1463 = vunpack.c.l.b16 %v1327
      %v1464 = vunpack.c.l.b16 %v1328
      %v1465 = vunpack.c.l.b16 %v1329
      %v1466 = vunpack.c.l.b16 %v1330
      %v1467 = vunpack.c.l.b16 %v1331
      %v1468 = vunpack.c.l.b16 %v1332
      %v1469 = vunpack.c.l.b16 %v1333
      %v1470 = vunpack.c.l.b16 %v1334
      %v1471 = vunpack.c.l.b16 %v1335
      %v1472 = vunpack.c.l.b16 %v1336
      %v1473 = vunpack.c.l.b16 %v1337
      %v1474 = vunpack.c.l.b16 %v1338
      %v1475 = vunpack.c.l.b16 %v1339
      %v1476 = vunpack.c.l.b16 %v1340
      %v1477 = vunpack.c.l.b16 %v1341
      %v1478 = vunpack.c.l.b16 %v1342
      %v1479 = vunpack.c.l.b16 %v1343
      %v1480 = vunpack.c.l.b16 %v1344
      %v1481 = vunpack.c.l.b16 %v1345
      %v1482 = vunpack.c.l.b16 %v1346
      %v1483 = vunpack.c.l.b16 %v1347
      %v1484 = vunpack.c.l.b16 %v1348
      %v1485 = vunpack.c.l.b16 %v1349
      %v1486 = vunpack.c.l.b16 %v1350
      %v1487 = vunpack.c.l.b16 %v1351
      %v1488 = vunpack.c.l.b16 %v1352
      %v1489 = vunpack.c.l.b16 %v1353
      %v1490 = vunpack.c.l.b16 %v1354
      %v1491 = vunpack.c.l.b16 %v1355
      %v1492 = vunpack.c.l.b16 %v1356
      %v1493 = vunpack.c.l.b16 %v1357
      %v1494 = vunpack.c.l.b16 %v1358
      %v1495 = vpack.c.b16 %v1460, %v1459
      %v1496 = vpack.c.b16 %v1462, %v1461
      %v1497 = vpack.c.b16 %v1464, %v1463
      %v1498 = vpack.c.b16 %v1466, %v1465
      %v1499 = vpack.c.b16 %v1468, %v1467
      %v1500 = vpack.c.b16 %v1470, %v1469
      %v1501 = vpack.c.b16 %v1472, %v1471
      %v1502 = vpack.c.b16 %v1474, %v1473
      %v1503 = vpack.c.b16 %v1476, %v1475
      %v1504 = vpack.c.b16 %v1478, %v1477
      %v1505 = vpack.c.b16 %v1480, %v1479
      %v1506 = vpack.c.b16 %v1482, %v1481
      %v1507 = vpack.c.b16 %v1484, %v1483
      %v1508 = vpack.c.b16 %v1486, %v1485
      %v1509 = vpack.c.b16 %v1488, %v1487
      %v1510 = vpack.c.b16 %v1490, %v1489
      %v1511 = vpack.c.b16 %v1492, %v1491
      %v1512 = vpack.c.b16 %v1494, %v1493
      %v1532 = vsel %vm258, %v1405, 0
      %v1535 = vsel %vm258, %v1408, 0
      %v1538 = vsel %vm258, %v1411, 0
      %v1541 = vsel %vm258, %v1414, 0
      %1543 = vmatpush.bf16.msra.mxu0 %v1502
      %1544 = vmatpush.bf16.msra.mxu0 %v1501
      %1545 = vmatpush.bf16.msra.mxu0 %v1500
      %1546 = vmatpush.bf16.msra.mxu0 %v1499
      %1547 = vmatpush.bf16.msra.mxu0 %v1498
      %1548 = vmatpush.bf16.msra.mxu0 %v1497
      %1549 = vmatpush.bf16.msra.mxu0 %v1496
      %1550 = vmatpush.bf16.msra.mxu0 %v1495
      %1551 = vmatmul.bf16.gmra.mxu0 %v1403
      %v1552 = vpop.f32.mrf.mxu0
      %v1553 = vadd.f32 %v1361, %v1552
      %v1554 = vpop.f32.mrf.mxu0
      %v1555 = vadd.f32 %v1361, %v1554
      %1556 = vmatmul.bf16.gmra.mxu0 %v1406
      %v1557 = vpop.f32.mrf.mxu0
      %v1558 = vadd.f32 %v1361, %v1557
      %v1559 = vpop.f32.mrf.mxu0
      %v1560 = vadd.f32 %v1361, %v1559
      %1561 = vmatmul.bf16.gmra.mxu0 %v1409
      %v1562 = vpop.f32.mrf.mxu0
      %v1563 = vadd.f32 %v1361, %v1562
      %v1564 = vpop.f32.mrf.mxu0
      %v1565 = vadd.f32 %v1361, %v1564
      %1566 = vmatmul.bf16.gmra.mxu0 %v1412
      %v1567 = vpop.f32.mrf.mxu0
      %v1568 = vadd.f32 %v1361, %v1567
      %v1569 = vpop.f32.mrf.mxu0
      %v1570 = vadd.f32 %v1361, %v1569
      %1571 = vdwg.mxu0
      %1572 = vmatpush.bf16.msra.mxu0 %v1510
      %1573 = vmatpush.bf16.msra.mxu0 %v1509
      %1574 = vmatpush.bf16.msra.mxu0 %v1508
      %1575 = vmatpush.bf16.msra.mxu0 %v1507
      %1576 = vmatpush.bf16.msra.mxu0 %v1506
      %1577 = vmatpush.bf16.msra.mxu0 %v1505
      %1578 = vmatpush.bf16.msra.mxu0 %v1504
      %1579 = vmatpush.bf16.msra.mxu0 %v1503
      %1580 = vmatmul.bf16.gmra.mxu0 %v1404
      %v1581 = vpop.f32.mrf.mxu0
      %v1582 = vadd.f32 %v1553, %v1581
      %v1583 = vpop.f32.mrf.mxu0
      %v1584 = vadd.f32 %v1555, %v1583
      %1585 = vmatmul.bf16.gmra.mxu0 %v1407
      %v1586 = vpop.f32.mrf.mxu0
      %v1587 = vadd.f32 %v1558, %v1586
      %v1588 = vpop.f32.mrf.mxu0
      %v1589 = vadd.f32 %v1560, %v1588
      %1590 = vmatmul.bf16.gmra.mxu0 %v1410
      %v1591 = vpop.f32.mrf.mxu0
      %v1592 = vadd.f32 %v1563, %v1591
      %v1593 = vpop.f32.mrf.mxu0
      %v1594 = vadd.f32 %v1565, %v1593
      %1595 = vmatmul.bf16.gmra.mxu0 %v1413
      %v1596 = vpop.f32.mrf.mxu0
      %v1597 = vadd.f32 %v1568, %v1596
      %v1598 = vpop.f32.mrf.mxu0
      %v1599 = vadd.f32 %v1570, %v1598
      %1600 = vdwg.mxu0
      %1601 = vmatpush.bf16.msra.mxu0 0
      %1602 = vmatpush.bf16.msra.mxu0 0
      %1603 = vmatpush.bf16.msra.mxu0 0
      %1604 = vmatpush.bf16.msra.mxu0 0
      %1605 = vmatpush.bf16.msra.mxu0 0
      %1606 = vmatpush.bf16.msra.mxu0 0
      %1607 = vmatpush.bf16.msra.mxu0 %v1512
      %1608 = vmatpush.bf16.msra.mxu0 %v1511
      %1609 = vmatmul.bf16.gmra.mxu0 %v1532
      %v1610 = vpop.f32.mrf.mxu0
      %v1611 = vadd.f32 %v1582, %v1610
      %v1612 = vpop.f32.mrf.mxu0
      %v1613 = vadd.f32 %v1584, %v1612
      %1614 = vmatmul.bf16.gmra.mxu0 %v1535
      %v1615 = vpop.f32.mrf.mxu0
      %v1616 = vadd.f32 %v1587, %v1615
      %v1617 = vpop.f32.mrf.mxu0
      %v1618 = vadd.f32 %v1589, %v1617
      %1619 = vmatmul.bf16.gmra.mxu0 %v1538
      %v1620 = vpop.f32.mrf.mxu0
      %v1621 = vadd.f32 %v1592, %v1620
      %v1622 = vpop.f32.mrf.mxu0
      %v1623 = vadd.f32 %v1594, %v1622
      %1624 = vmatmul.bf16.gmra.mxu0 %v1541
      %v1625 = vpop.f32.mrf.mxu0
      %v1626 = vadd.f32 %v1597, %v1625
      %v1627 = vpop.f32.mrf.mxu0
      %v1628 = vadd.f32 %v1599, %v1627
      %1629 = vdwg.mxu0
      %v1630 = vmax.f32 %v1611, 0.0
      %v1631 = vmax.f32 %v1613, 0.0
      %v1632 = vmax.f32 %v1616, 0.0
      %v1633 = vmax.f32 %v1618, 0.0
      %v1634 = vmax.f32 %v1621, 0.0
      %v1635 = vmax.f32 %v1623, 0.0
      %v1636 = vmax.f32 %v1626, 0.0
      %v1637 = vmax.f32 %v1628, 0.0
      %v1638 = vadd.f32 %v1630, %v226
      %v1639 = vadd.f32 %v1631, %v227
      %v1640 = vadd.f32 %v1632, %v228
      %v1641 = vadd.f32 %v1633, %v229
      %v1642 = vadd.f32 %v1634, %v230
      %v1643 = vadd.f32 %v1635, %v231
      %v1644 = vadd.f32 %v1636, %v232
      %v1645 = vadd.f32 %v1637, %v233
      %1646 = vst.msk [vmem:[%s224] sm:$0xff] %vm258, %v1638
      %1647 = vst.msk [vmem:[%s224 + $0x8] sm:$0xff] %vm258, %v1639
      %1648 = vst.msk [vmem:[%s224 + $0x10] sm:$0xff] %vm258, %v1640
      %1649 = vst.msk [vmem:[%s224 + $0x18] sm:$0xff] %vm258, %v1641
      %1650 = vst.msk [vmem:[%s224 + $0x20] sm:$0xff] %vm258, %v1642
      %1651 = vst.msk [vmem:[%s224 + $0x28] sm:$0xff] %vm258, %v1643
      %1652 = vst.msk [vmem:[%s224 + $0x30] sm:$0xff] %vm258, %v1644
      %1653 = vst.msk [vmem:[%s224 + $0x38] sm:$0xff] %vm258, %v1645
      %p1654 = scmp.lt.s32.totalorder %s16, 1
      %s1655 = scalar_select %p1654, %s16, 1
      %s1656 = smul.addr %s1655, 8
      %s1657 = smul.addr %s1656, 8
      %s1658 = scalar_lea.vmem %s5, %s1657
      // Predicated region
      $region41: #{tpu_custom_call.1} parent=39 // pred_check
        %p1659 = pneg %p144
      $region42: #{tpu_custom_call.1} parent=39 // pred_check_branch
        %1661 = sbr.rel (%p1659) target = $region44
      $region43: #{tpu_custom_call.1} parent=39 // pred_region
        _
      $region44: #{tpu_custom_call.1} parent=39 // pred_fallthru
        _
    $region40: #{tpu_custom_call.1} parent=5 // pred_fallthru
      _
    %p1662 = scmp.le.s32.totalorder 2, %s11
    // Predicated region
    $region45: #{tpu_custom_call.1} parent=5 // pred_check
      %p1663 = pneg %p1662
    $region46: #{tpu_custom_call.1} parent=5 // pred_check_branch
      %1665 = sbr.rel (%p1663) target = $region48
    $region47: #{tpu_custom_call.1} parent=5 // pred_region
      %s1666 = ssub.s32 %s11, 2
      // Predicated region
      $region49: #{tpu_custom_call.1} parent=47 // pred_check
        %p1667 = pneg %p150
      $region50: #{tpu_custom_call.1} parent=47 // pred_check_branch
        %1669 = sbr.rel (%p1667) target = $region52
      $region51: #{tpu_custom_call.1} parent=47 // pred_region
        %p1670 = scmp.lt.s32.totalorder %s17, 1
        %s1671 = scalar_select %p1670, %s17, 1
        %s1672 = smul.addr %s1671, 8
        %s1673 = smul.addr %s1672, 8
        %s1674 = scalar_lea.vmem %s5, %s1673
      $region52: #{tpu_custom_call.1} parent=47 // pred_fallthru
        _
    $region48: #{tpu_custom_call.1} parent=5 // pred_fallthru
      _
  $region6: #{tpu_custom_call.1} parent=0 // loop_footer
    %s15 = sadd.s32 1, %s11
  $region7: #{tpu_custom_call.1} parent=0 // loop_footer_branch
    %10 = sbr.rel target = $region3
  $region8: #{tpu_custom_call.1} parent=0 // loop_exit
    _

</llo_original>
